<compile_context>
chip_gen: v7x
topology: tpu7x:2x2x1
jax: 0.10.0
libtpu: 0.0.40
codegen_flags: <defaults>
</compile_context>

<pallas_src>
import math

import jax
import jax.numpy as jnp
import numpy as np
from jax.experimental import pallas as pl
from jax.experimental.pallas import tpu as pltpu

BN_EPS = 1e-5
COMPUTE_DTYPE = jnp.bfloat16     # MXU-native on v5e/v6e/v7x; accumulation stays f32


# ---------------------------------------------------------------------------
# Generation-aware tiling plan.
# ---------------------------------------------------------------------------
def _round_up(x, m):
    return ((x + m - 1) // m) * m


def _tpu_plan():
    """Tile caps, scoped-VMEM limit and min row-tile count for this TPU generation."""
    kind = ""
    try:
        kind = jax.devices()[0].device_kind.lower()
    except Exception:  # defensive: fall through to conservative defaults
        pass
    if "v7" in kind:
        # v7x: 64 MiB physical VMEM (half of v5e/v6e).  tile_r=1024/tile_k=2048
        # at Dp=128 is ~12 MiB of buffers -> well under a 40 MiB scoped limit.
        # Keep >= 2 row tiles so the "parallel" axis shards across the 2 TCs.
        return dict(cap_r=1024, cap_k=2048, vmem_limit=40 * 2**20, min_row_tiles=2)
    if "v5" in kind or "v6" in kind:
        # v5e/v6e: 128 MiB VMEM and the most HBM-bound generations -> biggest
        # tiles (fewest ~0.35us grid steps, least neighbour-feature re-stream).
        return dict(cap_r=1024, cap_k=4096, vmem_limit=96 * 2**20, min_row_tiles=1)
    # Unknown / older generation: conservative defaults.
    return dict(cap_r=512, cap_k=1024, vmem_limit=32 * 2**20, min_row_tiles=1)


def _plan_tiles(n, cap_r, cap_k, min_row_tiles=1):
    """Pad a node count and pick its row tile / contraction tile.

    The same node set is the row axis of one branch and the contraction axis of
    the other, so the padded size must be divisible by both tiles.  Tiles are
    multiples of 128; tile counts are powers of two so one padded size serves
    both roles with small waste.
    """
    n_p = _round_up(max(n, 128), 128)

    def n_tiles(cap, lo):
        nt = lo
        while n_p > nt * cap:
            nt *= 2
        return nt

    lo_r = min_row_tiles if n_p >= 128 * min_row_tiles else 1
    nt_r = n_tiles(cap_r, lo_r)
    nt_k = n_tiles(cap_k, 1)
    n_pad = _round_up(n_p, 128 * max(nt_r, nt_k))
    return n_pad, n_pad // nt_r, n_pad // nt_k


# ---------------------------------------------------------------------------
# Kernel: one bipartite-update branch.
#   rows    = "self" node set (the one being updated)
#   K       = "neighbour" node set (contraction dim of the aggregation)
#   acc_ref = f32 accumulator for agg = adj @ nbr_feats, resident across K.
# ---------------------------------------------------------------------------
def _branch_kernel(adj_ref, nbr_ref, self_ref, w1a_ref, w1b_ref, w2_ref, b_ref,
                   out_ref, acc_ref):
    k = pl.program_id(1)

    @pl.when(k == 0)
    def _():
        acc_ref[...] = jnp.zeros_like(acc_ref)

    # Sparse aggregation expressed as an MXU matmul (f32 accumulation).
    acc_ref[...] += jnp.dot(adj_ref[...], nbr_ref[...],
                            preferred_element_type=jnp.float32)

    @pl.when(k == pl.num_programs(1) - 1)
    def _():
        x_f32 = self_ref[...]                      # f32 (exact residual)
        w1a = w1a_ref[...]
        cdt = w1a.dtype                            # compute dtype (bf16)
        agg = acc_ref[...]                         # f32

        # First Linear on concat([x, agg]); eval-BatchNorm already folded in.
        # NOTE: Dp=128 only uses half the 256-wide MXU on v6e/v7x; acceptable
        # while the kernel is HBM-bound on the adjacency stream.
        h = (jnp.dot(x_f32.astype(cdt), w1a, preferred_element_type=jnp.float32)
             + jnp.dot(agg.astype(cdt), w1b_ref[...],
                       preferred_element_type=jnp.float32)
             + b_ref[0:1, :])
        h = jnp.maximum(h, 0.0)                    # ReLU (dropout == identity, eval)

        # Output Linear + residual.
        y = (jnp.dot(h.astype(cdt), w2_ref[...], preferred_element_type=jnp.float32)
             + b_ref[1:2, :])
        out_ref[...] = x_f32 + y


def _const_spec(shape, pipeline_mode):
    if pipeline_mode is None:
        return pl.BlockSpec(shape, lambda i, k: (0, 0))
    return pl.BlockSpec(shape, lambda i, k: (0, 0), pipeline_mode=pipeline_mode)


def _run_branch(adj, nbr_feats, self_feats, w1a, w1b, w2, biases,
                tile_r, tile_k, vmem_limit):
    """adj: [R, K] (compute dtype), nbr_feats: [K, Dp] (compute dtype),
    self_feats: [R, Dp] f32.  Returns [R, Dp] f32."""
    R, K = adj.shape
    Dp = nbr_feats.shape[1]
    grid = (R // tile_r, K // tile_k)

    # Advisory cost model: aggregation matmul + 3 epilogue matmuls;
    # adjacency stream + neighbour re-stream (once per row tile) + feats + params.
    cost = pl.CostEstimate(
        flops=2 * R * K * Dp + 6 * R * Dp * Dp,
        transcendentals=0,
        bytes_accessed=(R * K * adj.dtype.itemsize
                        + grid[0] * K * Dp * nbr_feats.dtype.itemsize
                        + 2 * R * Dp * 4
                        + 3 * Dp * Dp * w1a.dtype.itemsize + 2 * Dp * 4),
    )

    def build(param_mode):
        return pl.pallas_call(
            _branch_kernel,
            out_shape=jax.ShapeDtypeStruct((R, Dp), jnp.float32),
            grid_spec=pltpu.PrefetchScalarGridSpec(
                num_scalar_prefetch=0,
                grid=grid,
                in_specs=[
                    # Streaming tiles (double-buffered DMA overlaps compute):
                    pl.BlockSpec((tile_r, tile_k), lambda i, k: (i, k)),  # adjacency
                    pl.BlockSpec((tile_k, Dp), lambda i, k: (k, 0)),      # nbr feats
                    pl.BlockSpec((tile_r, Dp), lambda i, k: (i, 0)),      # self feats
                    # Grid-invariant parameters (single-buffered when supported):
                    _const_spec((Dp, Dp), param_mode),                    # W1 (self)
                    _const_spec((Dp, Dp), param_mode),                    # W1 (agg)
                    _const_spec((Dp, Dp), param_mode),                    # W2
                    _const_spec((2, Dp), param_mode),                     # packed biases
                ],
                out_specs=pl.BlockSpec((tile_r, Dp), lambda i, k: (i, 0)),
                scratch_shapes=[pltpu.VMEM((tile_r, Dp), jnp.float32)],
            ),
            compiler_params=pltpu.CompilerParams(
                dimension_semantics=("parallel", "arbitrary"),
                vmem_limit_bytes=vmem_limit,
            ),
            cost_estimate=cost,
        )

    args = (adj, nbr_feats, self_feats, w1a, w1b, w2, biases)
    try:
        # Single-buffer the never-changing parameter blocks: frees VMEM for the
        # big streaming tiles (matters most inside v7x's 64 MiB VMEM at large Dp).
        return jax.block_until_ready(build(pl.Buffered(1))(*args))
    except Exception:
        # Running jax does not support pipeline_mode here: default buffering.
        return jax.block_until_ready(build(None)(*args))


# ---------------------------------------------------------------------------
# Wrapper: padding, adjacency construction, BN folding (glue), kernel calls.
# ---------------------------------------------------------------------------
def _pad2(x, rows, cols):
    return jnp.pad(x, ((0, rows - x.shape[0]), (0, cols - x.shape[1])))


def _fold_bn(w1a, w1b, b1, gamma, beta, mean, var):
    """Fold eval-mode BatchNorm1d into the preceding Linear."""
    scale = gamma * jax.lax.rsqrt(var + BN_EPS)            # [1, H]
    return w1a * scale, w1b * scale, (b1 - mean) * scale + beta


def bipartite_message_passing(var_feats, constr_feats, edge_index, edge_attr, params):
    n_vars, var_dim = var_feats.shape
    n_constrs, constr_dim = constr_feats.shape
    hidden = params["w2_v"].shape[1]
    # Residual + index_add into zeros_like require equal dims in the module.
    assert var_dim == constr_dim == hidden

    plan = _tpu_plan()
    Dp = _round_up(max(hidden, 128), 128)
    Nv_p, tv_r, tv_k = _plan_tiles(n_vars, plan["cap_r"], plan["cap_k"],
                                   plan["min_row_tiles"])
    Nc_p, tc_r, tc_k = _plan_tiles(n_constrs, plan["cap_r"], plan["cap_k"],
                                   plan["min_row_tiles"])

    src, dst = edge_index[0], edge_index[1]
    ea = edge_attr.astype(jnp.float32)

    # One f32 scatter-add builds the weighted bipartite adjacency
    # A_cv[c, v] = sum of edge_attr over edges (v -> c); the second orientation
    # is a transpose of the already-narrow compute-dtype copy (half the scatter
    # work, one dense f32 HBM temp dropped).
    a_cv = (jnp.zeros((Nc_p, Nv_p), jnp.float32)
            .at[dst, src].add(ea)
            .astype(COMPUTE_DTYPE))                         # [Nc_p, Nv_p]
    a_vc = a_cv.T                                           # [Nv_p, Nc_p]

    vf_p = _pad2(var_feats.astype(jnp.float32), Nv_p, Dp)   # f32 "self" copies
    cf_p = _pad2(constr_feats.astype(jnp.float32), Nc_p, Dp)
    vf_c = vf_p.astype(COMPUTE_DTYPE)                       # bf16 "neighbour" copies
    cf_c = cf_p.astype(COMPUTE_DTYPE)

    def prep_branch(pfx):
        w1a, w1b, b1 = _fold_bn(
            params[f"w1a_{pfx}"], params[f"w1b_{pfx}"], params[f"b1_{pfx}"],
            params[f"g_{pfx}"], params[f"be_{pfx}"],
            params[f"mu_{pfx}"], params[f"sg_{pfx}"])
        w1a_p = _pad2(w1a, Dp, Dp).astype(COMPUTE_DTYPE)
        w1b_p = _pad2(w1b, Dp, Dp).astype(COMPUTE_DTYPE)
        w2_p = _pad2(params[f"w2_{pfx}"], Dp, Dp).astype(COMPUTE_DTYPE)
        biases = jnp.concatenate(
            [_pad2(b1, 1, Dp), _pad2(params[f"b2_{pfx}"], 1, Dp)], axis=0)  # [2, Dp]
        return w1a_p, w1b_p, w2_p, biases

    w1a_v, w1b_v, w2_v, b_v = prep_branch("v")
    w1a_c, w1b_c, w2_c, b_c = prep_branch("c")

    vmem_limit = plan["vmem_limit"]
    # Variable branch: rows = variables, contraction over constraints.
    var_out = _run_branch(a_vc, cf_c, vf_p, w1a_v, w1b_v, w2_v, b_v,
                          tv_r, tc_k, vmem_limit)
    # Constraint branch: rows = constraints, contraction over variables.
    con_out = _run_branch(a_cv, vf_c, cf_p, w1a_c, w1b_c, w2_c, b_c,
                          tc_r, tv_k, vmem_limit)

    return var_out[:n_vars, :hidden], con_out[:n_constrs, :hidden]


# ---------------------------------------------------------------------------
# Synthetic parameters + pure-JAX reference (mirrors the PyTorch forward, eval).
# ---------------------------------------------------------------------------
def _make_params(key, var_dim, constr_dim, hidden):
    ks = jax.random.split(key, 8)

    def linear(k, fan_in, fan_out):
        bound = 1.0 / np.sqrt(fan_in)
        kw, kb = jax.random.split(k)
        w = jax.random.uniform(kw, (fan_in, fan_out), jnp.float32, -bound, bound)
        b = jax.random.uniform(kb, (1, fan_out), jnp.float32, -bound, bound)
        return w, b

    w1_v, b1_v = linear(ks[0], var_dim + hidden, hidden)
    w2_v, b2_v = linear(ks[1], hidden, hidden)
    w1_c, b1_c = linear(ks[2], constr_dim + hidden, hidden)
    w2_c, b2_c = linear(ks[3], hidden, hidden)

    ones = jnp.ones((1, hidden), jnp.float32)
    zeros = jnp.zeros((1, hidden), jnp.float32)

    return dict(
        w1a_v=w1_v[:var_dim], w1b_v=w1_v[var_dim:], b1_v=b1_v,
        g_v=ones, be_v=zeros, mu_v=zeros, sg_v=ones,
        w2_v=w2_v, b2_v=b2_v,
        w1a_c=w1_c[:constr_dim], w1b_c=w1_c[constr_dim:], b1_c=b1_c,
        g_c=ones, be_c=zeros, mu_c=zeros, sg_c=ones,
        w2_c=w2_c, b2_c=b2_c,
    )


def _reference(var_feats, constr_feats, edge_index, edge_attr, params):
    src, dst = edge_index[0], edge_index[1]
    v2c_msg = var_feats[src] * edge_attr[:, None]
    constr_agg = jnp.zeros_like(constr_feats).at[dst].add(v2c_msg)
    c2v_msg = constr_feats[dst] * edge_attr[:, None]
    var_agg = jnp.zeros_like(var_feats).at[src].add(c2v_msg)

    def branch(x, agg, pfx):
        h = (x @ params[f"w1a_{pfx}"] + agg @ params[f"w1b_{pfx}"]
             + params[f"b1_{pfx}"])
        h = ((h - params[f"mu_{pfx}"]) / jnp.sqrt(params[f"sg_{pfx}"] + BN_EPS)
             * params[f"g_{pfx}"] + params[f"be_{pfx}"])
        h = jnp.maximum(h, 0.0)
        return x + h @ params[f"w2_{pfx}"] + params[f"b2_{pfx}"]

    return branch(var_feats, var_agg, "v"), branch(constr_feats, constr_agg, "c")


if __name__ == "__main__":
    # Small shapes: var_dim == constr_dim == hidden_dim (required by the module).
    n_vars, n_constrs, n_edges = 16, 8, 24
    var_dim = constr_dim = hidden = 32

    key = jax.random.PRNGKey(0)
    k_vf, k_cf, k_src, k_dst, k_ea, k_par = jax.random.split(key, 6)

    var_feats = jax.random.normal(k_vf, (n_vars, var_dim), jnp.float32)
    constr_feats = jax.random.normal(k_cf, (n_constrs, constr_dim), jnp.float32)
    src = jax.random.randint(k_src, (n_edges,), 0, n_vars, jnp.int32)
    dst = jax.random.randint(k_dst, (n_edges,), 0, n_constrs, jnp.int32)
    edge_index = jnp.stack([src, dst], axis=0)          # [2, n_edges]
    edge_attr = jax.random.normal(k_ea, (n_edges,), jnp.float32)

    params = _make_params(k_par, var_dim, constr_dim, hidden)

    var_out, con_out = jax.block_until_ready(
        bipartite_message_passing(var_feats, constr_feats, edge_index, edge_attr, params))

    ref_var, ref_con = _reference(var_feats, constr_feats, edge_index, edge_attr, params)
    # Tolerance accounts for bf16 MXU operands (f32 accumulation).
    np.testing.assert_allclose(np.asarray(var_out), np.asarray(ref_var), rtol=5e-2, atol=5e-2)
    np.testing.assert_allclose(np.asarray(con_out), np.asarray(ref_con), rtol=5e-2, atol=5e-2)

    print("KERNEL_OK")
</pallas_src>

<mosaic_0001>
module attributes {stable_mosaic.version = 11 : i64} {
  func.func @_branch_kernel(%arg0: i32, %arg1: i32, %arg2: memref<128x128xbf16, #tpu.memory_space<vmem>>, %arg3: memref<128x128xbf16, #tpu.memory_space<vmem>>, %arg4: memref<128x128xf32, #tpu.memory_space<vmem>>, %arg5: memref<128x128xbf16, #tpu.memory_space<vmem>>, %arg6: memref<128x128xbf16, #tpu.memory_space<vmem>>, %arg7: memref<128x128xbf16, #tpu.memory_space<vmem>>, %arg8: memref<2x128xf32, #tpu.memory_space<vmem>>, %arg9: memref<128x128xf32, #tpu.memory_space<vmem>>, %arg10: memref<128x128xf32, #tpu.memory_space<vmem>>) attributes {dimension_semantics = [#tpu.dimension_semantics<parallel>, #tpu.dimension_semantics<arbitrary>], iteration_bounds = array<i64: 1, 1>, scalar_prefetch = 0 : i64, scratch_operands = 1 : i64, tpu.core_type = #tpu.core_type<tc>, window_params = [{transform_indices = @transform_0, window_bounds = array<i64: 128, 128>}, {transform_indices = @transform_1, window_bounds = array<i64: 128, 128>}, {transform_indices = @transform_2, window_bounds = array<i64: 128, 128>}, {pipeline_mode = #tpu.pipeline_mode<synchronous>, transform_indices = @transform_3, window_bounds = array<i64: 128, 128>}, {pipeline_mode = #tpu.pipeline_mode<synchronous>, transform_indices = @transform_4, window_bounds = array<i64: 128, 128>}, {pipeline_mode = #tpu.pipeline_mode<synchronous>, transform_indices = @transform_5, window_bounds = array<i64: 128, 128>}, {pipeline_mode = #tpu.pipeline_mode<synchronous>, transform_indices = @transform_6, window_bounds = array<i64: 2, 128>}, {transform_indices = @transform_7, window_bounds = array<i64: 128, 128>}]} {
    %c0_i32 = arith.constant 0 : i32
    %0 = arith.cmpi eq, %arg1, %c0_i32 : i32
    %1 = arith.extui %0 : i1 to i32
    %c0_i32_0 = arith.constant 0 : i32
    %2 = arith.cmpi ne, %1, %c0_i32_0 : i32
    scf.if %2 {
      %cst_10 = arith.constant 0.000000e+00 : f32
      %12 = vector.broadcast %cst_10 : f32 to vector<128x128xf32>
      %c0_11 = arith.constant 0 : index
      %c0_12 = arith.constant 0 : index
      %13 = vector.load %arg10[%c0_11, %c0_12] : memref<128x128xf32, #tpu.memory_space<vmem>>, vector<128x128xf32>
      tpu.vector_store %arg10[%c0_11, %c0_12], %12 {strides = array<i32>} : memref<128x128xf32, #tpu.memory_space<vmem>>, vector<128x128xf32>,
    } else {
    }
    %c0 = arith.constant 0 : index
    %c0_1 = arith.constant 0 : index
    %3 = vector.load %arg10[%c0, %c0_1] : memref<128x128xf32, #tpu.memory_space<vmem>>, vector<128x128xf32>
    %c0_2 = arith.constant 0 : index
    %c0_3 = arith.constant 0 : index
    %4 = vector.load %arg2[%c0_2, %c0_3] : memref<128x128xbf16, #tpu.memory_space<vmem>>, vector<128x128xbf16>
    %c0_4 = arith.constant 0 : index
    %c0_5 = arith.constant 0 : index
    %5 = vector.load %arg3[%c0_4, %c0_5] : memref<128x128xbf16, #tpu.memory_space<vmem>>, vector<128x128xbf16>
    %cst = arith.constant dense<0.000000e+00> : vector<128x128xf32>
    %6 = tpu.matmul %4, %5, %cst {dimension_numbers = #tpu.dot_dimension_numbers<[1], [0], [0], [1], [0, 0, 1, 1], [], []>} : vector<128x128xbf16>, vector<128x128xbf16>, vector<128x128xf32> -> vector<128x128xf32>
    %7 = arith.addf %3, %6 : vector<128x128xf32>
    %c0_6 = arith.constant 0 : index
    %c0_7 = arith.constant 0 : index
    %8 = vector.load %arg10[%c0_6, %c0_7] : memref<128x128xf32, #tpu.memory_space<vmem>>, vector<128x128xf32>
    tpu.vector_store %arg10[%c0_6, %c0_7], %7 {strides = array<i32>} : memref<128x128xf32, #tpu.memory_space<vmem>>, vector<128x128xf32>,
    %c0_i32_8 = arith.constant 0 : i32
    %9 = arith.cmpi eq, %arg1, %c0_i32_8 : i32
    %10 = arith.extui %9 : i1 to i32
    %c0_i32_9 = arith.constant 0 : i32
    %11 = arith.cmpi ne, %10, %c0_i32_9 : i32
    scf.if %11 {
      %c0_10 = arith.constant 0 : index
      %c0_11 = arith.constant 0 : index
      %12 = vector.load %arg4[%c0_10, %c0_11] : memref<128x128xf32, #tpu.memory_space<vmem>>, vector<128x128xf32>
      %c0_12 = arith.constant 0 : index
      %c0_13 = arith.constant 0 : index
      %13 = vector.load %arg5[%c0_12, %c0_13] : memref<128x128xbf16, #tpu.memory_space<vmem>>, vector<128x128xbf16>
      %c0_14 = arith.constant 0 : index
      %c0_15 = arith.constant 0 : index
      %14 = vector.load %arg10[%c0_14, %c0_15] : memref<128x128xf32, #tpu.memory_space<vmem>>, vector<128x128xf32>
      %15 = arith.truncf %12 : vector<128x128xf32> to vector<128x128xbf16>
      %cst_16 = arith.constant dense<0.000000e+00> : vector<128x128xf32>
      %16 = tpu.matmul %15, %13, %cst_16 {dimension_numbers = #tpu.dot_dimension_numbers<[1], [0], [0], [1], [0, 0, 1, 1], [], []>} : vector<128x128xbf16>, vector<128x128xbf16>, vector<128x128xf32> -> vector<128x128xf32>
      %17 = arith.truncf %14 : vector<128x128xf32> to vector<128x128xbf16>
      %c0_17 = arith.constant 0 : index
      %c0_18 = arith.constant 0 : index
      %18 = vector.load %arg6[%c0_17, %c0_18] : memref<128x128xbf16, #tpu.memory_space<vmem>>, vector<128x128xbf16>
      %cst_19 = arith.constant dense<0.000000e+00> : vector<128x128xf32>
      %19 = tpu.matmul %17, %18, %cst_19 {dimension_numbers = #tpu.dot_dimension_numbers<[1], [0], [0], [1], [0, 0, 1, 1], [], []>} : vector<128x128xbf16>, vector<128x128xbf16>, vector<128x128xf32> -> vector<128x128xf32>
      %20 = arith.addf %16, %19 : vector<128x128xf32>
      %c0_20 = arith.constant 0 : index
      %c0_21 = arith.constant 0 : index
      %21 = vector.load %arg8[%c0_20, %c0_21] : memref<2x128xf32, #tpu.memory_space<vmem>>, vector<1x128xf32>
      %22 = vector.broadcast %21 : vector<1x128xf32> to vector<128x128xf32>
      %23 = arith.addf %20, %22 : vector<128x128xf32>
      %cst_22 = arith.constant 0.000000e+00 : f32
      %24 = vector.broadcast %cst_22 : f32 to vector<128x128xf32>
      %25 = arith.maximumf %23, %24 : vector<128x128xf32>
      %26 = arith.truncf %25 : vector<128x128xf32> to vector<128x128xbf16>
      %c0_23 = arith.constant 0 : index
      %c0_24 = arith.constant 0 : index
      %27 = vector.load %arg7[%c0_23, %c0_24] : memref<128x128xbf16, #tpu.memory_space<vmem>>, vector<128x128xbf16>
      %cst_25 = arith.constant dense<0.000000e+00> : vector<128x128xf32>
      %28 = tpu.matmul %26, %27, %cst_25 {dimension_numbers = #tpu.dot_dimension_numbers<[1], [0], [0], [1], [0, 0, 1, 1], [], []>} : vector<128x128xbf16>, vector<128x128xbf16>, vector<128x128xf32> -> vector<128x128xf32>
      %c1 = arith.constant 1 : index
      %c0_26 = arith.constant 0 : index
      %29 = vector.load %arg8[%c1, %c0_26] : memref<2x128xf32, #tpu.memory_space<vmem>>, vector<1x128xf32>
      %30 = vector.broadcast %29 : vector<1x128xf32> to vector<128x128xf32>
      %31 = arith.addf %28, %30 : vector<128x128xf32>
      %32 = arith.addf %12, %31 : vector<128x128xf32>
      %c0_27 = arith.constant 0 : index
      %c0_28 = arith.constant 0 : index
      %33 = vector.load %arg9[%c0_27, %c0_28] : memref<128x128xf32, #tpu.memory_space<vmem>>, vector<128x128xf32>
      tpu.vector_store %arg9[%c0_27, %c0_28], %32 {strides = array<i32>} : memref<128x128xf32, #tpu.memory_space<vmem>>, vector<128x128xf32>,
    } else {
    }
    return
  }
  func.func @transform_0(%arg0: i32, %arg1: i32) -> (i32, i32) {
    %c0_i32 = arith.constant 0 : i32
    return %arg0, %arg1 : i32, i32
  }
  func.func @transform_1(%arg0: i32, %arg1: i32) -> (i32, i32) {
    %c0_i32 = arith.constant 0 : i32
    %c0_i32_0 = arith.constant 0 : i32
    return %arg1, %c0_i32 : i32, i32
  }
  func.func @transform_2(%arg0: i32, %arg1: i32) -> (i32, i32) {
    %c0_i32 = arith.constant 0 : i32
    %c0_i32_0 = arith.constant 0 : i32
    return %arg0, %c0_i32 : i32, i32
  }
  func.func @transform_3(%arg0: i32, %arg1: i32) -> (i32, i32) {
    %c0_i32 = arith.constant 0 : i32
    %c0_i32_0 = arith.constant 0 : i32
    %c0_i32_1 = arith.constant 0 : i32
    return %c0_i32, %c0_i32_0 : i32, i32
  }
  func.func @transform_4(%arg0: i32, %arg1: i32) -> (i32, i32) {
    %c0_i32 = arith.constant 0 : i32
    %c0_i32_0 = arith.constant 0 : i32
    %c0_i32_1 = arith.constant 0 : i32
    return %c0_i32, %c0_i32_0 : i32, i32
  }
  func.func @transform_5(%arg0: i32, %arg1: i32) -> (i32, i32) {
    %c0_i32 = arith.constant 0 : i32
    %c0_i32_0 = arith.constant 0 : i32
    %c0_i32_1 = arith.constant 0 : i32
    return %c0_i32, %c0_i32_0 : i32, i32
  }
  func.func @transform_6(%arg0: i32, %arg1: i32) -> (i32, i32) {
    %c0_i32 = arith.constant 0 : i32
    %c0_i32_0 = arith.constant 0 : i32
    %c0_i32_1 = arith.constant 0 : i32
    return %c0_i32, %c0_i32_0 : i32, i32
  }
  func.func @transform_7(%arg0: i32, %arg1: i32) -> (i32, i32) {
    %c0_i32 = arith.constant 0 : i32
    %c0_i32_0 = arith.constant 0 : i32
    return %arg0, %c0_i32 : i32, i32
  }
}

module attributes {stable_mosaic.version = 11 : i64} {
  func.func @_branch_kernel(%arg0: i32, %arg1: i32, %arg2: memref<128x128xbf16, #tpu.memory_space<vmem>>, %arg3: memref<128x128xbf16, #tpu.memory_space<vmem>>, %arg4: memref<128x128xf32, #tpu.memory_space<vmem>>, %arg5: memref<128x128xbf16, #tpu.memory_space<vmem>>, %arg6: memref<128x128xbf16, #tpu.memory_space<vmem>>, %arg7: memref<128x128xbf16, #tpu.memory_space<vmem>>, %arg8: memref<2x128xf32, #tpu.memory_space<vmem>>, %arg9: memref<128x128xf32, #tpu.memory_space<vmem>>, %arg10: memref<128x128xf32, #tpu.memory_space<vmem>>) attributes {dimension_semantics = [#tpu.dimension_semantics<parallel>, #tpu.dimension_semantics<arbitrary>], iteration_bounds = array<i64: 1, 1>, scalar_prefetch = 0 : i64, scratch_operands = 1 : i64, tpu.core_type = #tpu.core_type<tc>, window_params = [{transform_indices = @transform_0, window_bounds = array<i64: 128, 128>}, {transform_indices = @transform_1, window_bounds = array<i64: 128, 128>}, {transform_indices = @transform_2, window_bounds = array<i64: 128, 128>}, {pipeline_mode = #tpu.pipeline_mode<synchronous>, transform_indices = @transform_3, window_bounds = array<i64: 128, 128>}, {pipeline_mode = #tpu.pipeline_mode<synchronous>, transform_indices = @transform_4, window_bounds = array<i64: 128, 128>}, {pipeline_mode = #tpu.pipeline_mode<synchronous>, transform_indices = @transform_5, window_bounds = array<i64: 128, 128>}, {pipeline_mode = #tpu.pipeline_mode<synchronous>, transform_indices = @transform_6, window_bounds = array<i64: 2, 128>}, {transform_indices = @transform_7, window_bounds = array<i64: 128, 128>}]} {
    %c0_i32 = arith.constant 0 : i32
    %0 = arith.cmpi eq, %arg1, %c0_i32 : i32
    %1 = arith.extui %0 : i1 to i32
    %c0_i32_0 = arith.constant 0 : i32
    %2 = arith.cmpi ne, %1, %c0_i32_0 : i32
    scf.if %2 {
      %cst_10 = arith.constant 0.000000e+00 : f32
      %12 = vector.broadcast %cst_10 : f32 to vector<128x128xf32>
      %c0_11 = arith.constant 0 : index
      %c0_12 = arith.constant 0 : index
      %13 = vector.load %arg10[%c0_11, %c0_12] : memref<128x128xf32, #tpu.memory_space<vmem>>, vector<128x128xf32>
      tpu.vector_store %arg10[%c0_11, %c0_12], %12 {strides = array<i32>} : memref<128x128xf32, #tpu.memory_space<vmem>>, vector<128x128xf32>,
    } else {
    }
    %c0 = arith.constant 0 : index
    %c0_1 = arith.constant 0 : index
    %3 = vector.load %arg10[%c0, %c0_1] : memref<128x128xf32, #tpu.memory_space<vmem>>, vector<128x128xf32>
    %c0_2 = arith.constant 0 : index
    %c0_3 = arith.constant 0 : index
    %4 = vector.load %arg2[%c0_2, %c0_3] : memref<128x128xbf16, #tpu.memory_space<vmem>>, vector<128x128xbf16>
    %c0_4 = arith.constant 0 : index
    %c0_5 = arith.constant 0 : index
    %5 = vector.load %arg3[%c0_4, %c0_5] : memref<128x128xbf16, #tpu.memory_space<vmem>>, vector<128x128xbf16>
    %cst = arith.constant dense<0.000000e+00> : vector<128x128xf32>
    %6 = tpu.matmul %4, %5, %cst {dimension_numbers = #tpu.dot_dimension_numbers<[1], [0], [0], [1], [0, 0, 1, 1], [], []>} : vector<128x128xbf16>, vector<128x128xbf16>, vector<128x128xf32> -> vector<128x128xf32>
    %7 = arith.addf %3, %6 : vector<128x128xf32>
    %c0_6 = arith.constant 0 : index
    %c0_7 = arith.constant 0 : index
    %8 = vector.load %arg10[%c0_6, %c0_7] : memref<128x128xf32, #tpu.memory_space<vmem>>, vector<128x128xf32>
    tpu.vector_store %arg10[%c0_6, %c0_7], %7 {strides = array<i32>} : memref<128x128xf32, #tpu.memory_space<vmem>>, vector<128x128xf32>,
    %c0_i32_8 = arith.constant 0 : i32
    %9 = arith.cmpi eq, %arg1, %c0_i32_8 : i32
    %10 = arith.extui %9 : i1 to i32
    %c0_i32_9 = arith.constant 0 : i32
    %11 = arith.cmpi ne, %10, %c0_i32_9 : i32
    scf.if %11 {
      %c0_10 = arith.constant 0 : index
      %c0_11 = arith.constant 0 : index
      %12 = vector.load %arg4[%c0_10, %c0_11] : memref<128x128xf32, #tpu.memory_space<vmem>>, vector<128x128xf32>
      %c0_12 = arith.constant 0 : index
      %c0_13 = arith.constant 0 : index
      %13 = vector.load %arg5[%c0_12, %c0_13] : memref<128x128xbf16, #tpu.memory_space<vmem>>, vector<128x128xbf16>
      %c0_14 = arith.constant 0 : index
      %c0_15 = arith.constant 0 : index
      %14 = vector.load %arg10[%c0_14, %c0_15] : memref<128x128xf32, #tpu.memory_space<vmem>>, vector<128x128xf32>
      %15 = arith.truncf %12 : vector<128x128xf32> to vector<128x128xbf16>
      %cst_16 = arith.constant dense<0.000000e+00> : vector<128x128xf32>
      %16 = tpu.matmul %15, %13, %cst_16 {dimension_numbers = #tpu.dot_dimension_numbers<[1], [0], [0], [1], [0, 0, 1, 1], [], []>} : vector<128x128xbf16>, vector<128x128xbf16>, vector<128x128xf32> -> vector<128x128xf32>
      %17 = arith.truncf %14 : vector<128x128xf32> to vector<128x128xbf16>
      %c0_17 = arith.constant 0 : index
      %c0_18 = arith.constant 0 : index
      %18 = vector.load %arg6[%c0_17, %c0_18] : memref<128x128xbf16, #tpu.memory_space<vmem>>, vector<128x128xbf16>
      %cst_19 = arith.constant dense<0.000000e+00> : vector<128x128xf32>
      %19 = tpu.matmul %17, %18, %cst_19 {dimension_numbers = #tpu.dot_dimension_numbers<[1], [0], [0], [1], [0, 0, 1, 1], [], []>} : vector<128x128xbf16>, vector<128x128xbf16>, vector<128x128xf32> -> vector<128x128xf32>
      %20 = arith.addf %16, %19 : vector<128x128xf32>
      %c0_20 = arith.constant 0 : index
      %c0_21 = arith.constant 0 : index
      %21 = vector.load %arg8[%c0_20, %c0_21] : memref<2x128xf32, #tpu.memory_space<vmem>>, vector<1x128xf32>
      %22 = vector.broadcast %21 : vector<1x128xf32> to vector<128x128xf32>
      %23 = arith.addf %20, %22 : vector<128x128xf32>
      %cst_22 = arith.constant 0.000000e+00 : f32
      %24 = vector.broadcast %cst_22 : f32 to vector<128x128xf32>
      %25 = arith.maximumf %23, %24 : vector<128x128xf32>
      %26 = arith.truncf %25 : vector<128x128xf32> to vector<128x128xbf16>
      %c0_23 = arith.constant 0 : index
      %c0_24 = arith.constant 0 : index
      %27 = vector.load %arg7[%c0_23, %c0_24] : memref<128x128xbf16, #tpu.memory_space<vmem>>, vector<128x128xbf16>
      %cst_25 = arith.constant dense<0.000000e+00> : vector<128x128xf32>
      %28 = tpu.matmul %26, %27, %cst_25 {dimension_numbers = #tpu.dot_dimension_numbers<[1], [0], [0], [1], [0, 0, 1, 1], [], []>} : vector<128x128xbf16>, vector<128x128xbf16>, vector<128x128xf32> -> vector<128x128xf32>
      %c1 = arith.constant 1 : index
      %c0_26 = arith.constant 0 : index
      %29 = vector.load %arg8[%c1, %c0_26] : memref<2x128xf32, #tpu.memory_space<vmem>>, vector<1x128xf32>
      %30 = vector.broadcast %29 : vector<1x128xf32> to vector<128x128xf32>
      %31 = arith.addf %28, %30 : vector<128x128xf32>
      %32 = arith.addf %12, %31 : vector<128x128xf32>
      %c0_27 = arith.constant 0 : index
      %c0_28 = arith.constant 0 : index
      %33 = vector.load %arg9[%c0_27, %c0_28] : memref<128x128xf32, #tpu.memory_space<vmem>>, vector<128x128xf32>
      tpu.vector_store %arg9[%c0_27, %c0_28], %32 {strides = array<i32>} : memref<128x128xf32, #tpu.memory_space<vmem>>, vector<128x128xf32>,
    } else {
    }
    return
  }
  func.func @transform_0(%arg0: i32, %arg1: i32) -> (i32, i32) {
    %c0_i32 = arith.constant 0 : i32
    return %arg0, %arg1 : i32, i32
  }
  func.func @transform_1(%arg0: i32, %arg1: i32) -> (i32, i32) {
    %c0_i32 = arith.constant 0 : i32
    %c0_i32_0 = arith.constant 0 : i32
    return %arg1, %c0_i32 : i32, i32
  }
  func.func @transform_2(%arg0: i32, %arg1: i32) -> (i32, i32) {
    %c0_i32 = arith.constant 0 : i32
    %c0_i32_0 = arith.constant 0 : i32
    return %arg0, %c0_i32 : i32, i32
  }
  func.func @transform_3(%arg0: i32, %arg1: i32) -> (i32, i32) {
    %c0_i32 = arith.constant 0 : i32
    %c0_i32_0 = arith.constant 0 : i32
    %c0_i32_1 = arith.constant 0 : i32
    return %c0_i32, %c0_i32_0 : i32, i32
  }
  func.func @transform_4(%arg0: i32, %arg1: i32) -> (i32, i32) {
    %c0_i32 = arith.constant 0 : i32
    %c0_i32_0 = arith.constant 0 : i32
    %c0_i32_1 = arith.constant 0 : i32
    return %c0_i32, %c0_i32_0 : i32, i32
  }
  func.func @transform_5(%arg0: i32, %arg1: i32) -> (i32, i32) {
    %c0_i32 = arith.constant 0 : i32
    %c0_i32_0 = arith.constant 0 : i32
    %c0_i32_1 = arith.constant 0 : i32
    return %c0_i32, %c0_i32_0 : i32, i32
  }
  func.func @transform_6(%arg0: i32, %arg1: i32) -> (i32, i32) {
    %c0_i32 = arith.constant 0 : i32
    %c0_i32_0 = arith.constant 0 : i32
    %c0_i32_1 = arith.constant 0 : i32
    return %c0_i32, %c0_i32_0 : i32, i32
  }
  func.func @transform_7(%arg0: i32, %arg1: i32) -> (i32, i32) {
    %c0_i32 = arith.constant 0 : i32
    %c0_i32_0 = arith.constant 0 : i32
    return %arg0, %c0_i32 : i32, i32
  }
}

</mosaic_0001>

<llo_original>
// kernel: tpu_custom_call.1
$region0: #{tpu_custom_call.1}
  #allocation0 [shape = 'u32[]', space=smem, size = 0x4, offset = 0x4, fixed_abs, tag = 'smem constant byte address 0x4 - core index']
  #allocation1 [shape = 'u32[144,128]{1,0:T(1,128)}', space=vmem, size = 0x12000, scoped, tag = 'internal scratch']
  #allocation2 [shape = 'f32[128,128]{1,0:T(8,128)}', space=vmem, size = 0x10000, scoped, tag = 'scratch operand']
  %s0 = inlined_call_operand.hbm [shape: bf16[128,128], index: 0, kind: input, shape index: {}]
  %s1 = inlined_call_operand.hbm [shape: bf16[128,128], index: 1, kind: input, shape index: {}]
  %s2 = inlined_call_operand.hbm [shape: f32[128,128], index: 2, kind: input, shape index: {}]
  %s3 = inlined_call_operand.hbm [shape: bf16[128,128], index: 3, kind: input, shape index: {}]
  %s4 = inlined_call_operand.hbm [shape: bf16[128,128], index: 4, kind: input, shape index: {}]
  %s5 = inlined_call_operand.hbm [shape: bf16[128,128], index: 5, kind: input, shape index: {}]
  %s6 = inlined_call_operand.vmem [shape: f32[2,128], index: 6, kind: input, shape index: {}]
  %s7 = inlined_call_operand.hbm [shape: f32[128,128], index: 7, kind: output, shape index: {}]
  %s8 = sld [smem:[#allocation0]]
  $region70: #{tpu_custom_call.1} parent=0
    _
  %s10 = ssub.s32 1, %s8
  %s11 = scalar_select 0, %s10, %s8
  $region1: #{tpu_custom_call.1} parent=0
    #allocation3 [shape = 'u8[32768]{0}', space=vmem, size = 0x8000, scoped, tag = 'input window, operand 0, single buffered']
    #allocation4 [shape = 's32[1]{0}', space=sflag, size = 0x4, scoped, tag = 'scoped memory for tpu_custom_call.1']
    #allocation5 [shape = 's32[1]{0}', space=sflag, size = 0x4, scoped, tag = 'scoped memory for tpu_custom_call.1']
    #allocation6 [shape = 'u8[32768]{0}', space=vmem, size = 0x8000, scoped, tag = 'input window, operand 1, single buffered']
    #allocation7 [shape = 's32[1]{0}', space=sflag, size = 0x4, scoped, tag = 'scoped memory for tpu_custom_call.1']
    #allocation8 [shape = 'u8[65536]{0}', space=vmem, size = 0x10000, scoped, tag = 'input window, operand 2, single buffered']
    #allocation9 [shape = 'u8[32768]{0}', space=vmem, size = 0x8000, scoped, tag = 'input window, operand 3, single buffered']
    #allocation10 [shape = 's32[1]{0}', space=sflag, size = 0x4, scoped, tag = 'scoped memory for tpu_custom_call.1']
    #allocation11 [shape = 'u8[32768]{0}', space=vmem, size = 0x8000, scoped, tag = 'input window, operand 4, single buffered']
    #allocation12 [shape = 'u8[32768]{0}', space=vmem, size = 0x8000, scoped, tag = 'input window, operand 5, single buffered']
    #allocation13 [shape = 's32[1]{0}', space=sflag, size = 0x4, scoped, tag = 'scoped memory for tpu_custom_call.1']
    #allocation14 [shape = 'u8[65536]{0}', space=vmem, size = 0x10000, scoped, tag = 'output window, operand 0, single buffered']
    %12 = vsyncpa [#allocation4], 0
    %13 = vsyncpa [#allocation7], 0
    %14 = vsyncpa [#allocation10], 0
    %15 = vsyncpa [#allocation13], 0
    %16 = vsyncpa [#allocation5], 0
    // Predicated region
    $region2: #{tpu_custom_call.1} parent=1 // pred_check
      _
    $region3: #{tpu_custom_call.1} parent=1 // pred_check_branch
      %18 = sbr.rel (0) target = $region5
    $region4: #{tpu_custom_call.1} parent=1 // pred_region
      %s20 = ssub.s32 1024, 1024
      %21 = vsyncadd [#allocation4], %s20
      %s22 = sshll.u32 [#allocation3], 4
      %s23 = int_to_ptr.vmem [resolvable:$true] %s22
      %28 = dma.hbm_to_vmem [thread:$0]  %s0, 1024, %s23, [#allocation4], 64, 64, 4
    $region5: #{tpu_custom_call.1} parent=1 // pred_fallthru
      _
    // Predicated region
    $region6: #{tpu_custom_call.1} parent=1 // pred_check
      _
    $region7: #{tpu_custom_call.1} parent=1 // pred_check_branch
      %30 = sbr.rel (0) target = $region9
    $region8: #{tpu_custom_call.1} parent=1 // pred_region
      %s32 = ssub.s32 1024, 1024
      %33 = vsyncadd [#allocation7], %s32
      %s34 = sshll.u32 [#allocation6], 4
      %s35 = int_to_ptr.vmem [resolvable:$true] %s34
      %40 = dma.hbm_to_vmem [thread:$0]  %s1, 1024, %s35, [#allocation7], 64, 64, 4
    $region9: #{tpu_custom_call.1} parent=1 // pred_fallthru
      _
    // Predicated region
    $region10: #{tpu_custom_call.1} parent=1 // pred_check
      _
    $region11: #{tpu_custom_call.1} parent=1 // pred_check_branch
      %42 = sbr.rel (0) target = $region13
    $region12: #{tpu_custom_call.1} parent=1 // pred_region
      %s44 = ssub.s32 2048, 2048
      %45 = vsyncadd [#allocation7], %s44
      %s46 = sshll.u32 [#allocation8], 4
      %s47 = int_to_ptr.vmem [resolvable:$true] %s46
      %52 = dma.hbm_to_vmem [thread:$0]  %s2, 2048, %s47, [#allocation7], 128, 128, 8
    $region13: #{tpu_custom_call.1} parent=1 // pred_fallthru
      _
    // Predicated region
    $region14: #{tpu_custom_call.1} parent=1 // pred_check
      _
    $region15: #{tpu_custom_call.1} parent=1 // pred_check_branch
      %54 = sbr.rel (0) target = $region17
    $region16: #{tpu_custom_call.1} parent=1 // pred_region
      %s56 = ssub.s32 1024, 1024
      %57 = vsyncadd [#allocation10], %s56
      %s58 = sshll.u32 [#allocation9], 4
      %s59 = int_to_ptr.vmem [resolvable:$true] %s58
      %64 = dma.hbm_to_vmem [thread:$0]  %s3, 1024, %s59, [#allocation10], 64, 64, 4
    $region17: #{tpu_custom_call.1} parent=1 // pred_fallthru
      _
    // Predicated region
    $region18: #{tpu_custom_call.1} parent=1 // pred_check
      _
    $region19: #{tpu_custom_call.1} parent=1 // pred_check_branch
      %66 = sbr.rel (0) target = $region21
    $region20: #{tpu_custom_call.1} parent=1 // pred_region
      %s68 = ssub.s32 1024, 1024
      %69 = vsyncadd [#allocation10], %s68
      %s70 = sshll.u32 [#allocation11], 4
      %s71 = int_to_ptr.vmem [resolvable:$true] %s70
      %76 = dma.hbm_to_vmem [thread:$0]  %s4, 1024, %s71, [#allocation10], 64, 64, 4
    $region21: #{tpu_custom_call.1} parent=1 // pred_fallthru
      _
    // Predicated region
    $region22: #{tpu_custom_call.1} parent=1 // pred_check
      _
    $region23: #{tpu_custom_call.1} parent=1 // pred_check_branch
      %78 = sbr.rel (0) target = $region25
    $region24: #{tpu_custom_call.1} parent=1 // pred_region
      %s80 = ssub.s32 1024, 1024
      %81 = vsyncadd [#allocation13], %s80
      %s82 = sshll.u32 [#allocation12], 4
      %s83 = int_to_ptr.vmem [resolvable:$true] %s82
      %88 = dma.hbm_to_vmem [thread:$0]  %s5, 1024, %s83, [#allocation13], 64, 64, 4
    $region25: #{tpu_custom_call.1} parent=1 // pred_fallthru
      _
    // Predicated region
    $region26: #{tpu_custom_call.1} parent=1 // pred_check
      _
    $region27: #{tpu_custom_call.1} parent=1 // pred_check_branch
      %90 = sbr.rel (0) target = $region29
    $region28: #{tpu_custom_call.1} parent=1 // pred_region
      _
    $region29: #{tpu_custom_call.1} parent=1 // pred_fallthru
      _
    // Predicated region
    $region30: #{tpu_custom_call.1} parent=1 // pred_check
      _
    $region31: #{tpu_custom_call.1} parent=1 // pred_check_branch
      %92 = sbr.rel (0) target = $region33
    $region32: #{tpu_custom_call.1} parent=1 // pred_region
      %93 = dma.done [#allocation4], 1024
    $region33: #{tpu_custom_call.1} parent=1 // pred_fallthru
      _
    // Predicated region
    $region34: #{tpu_custom_call.1} parent=1 // pred_check
      _
    $region35: #{tpu_custom_call.1} parent=1 // pred_check_branch
      %95 = sbr.rel (0) target = $region37
    $region36: #{tpu_custom_call.1} parent=1 // pred_region
      %96 = dma.done [#allocation7], 1024
    $region37: #{tpu_custom_call.1} parent=1 // pred_fallthru
      _
    // Predicated region
    $region38: #{tpu_custom_call.1} parent=1 // pred_check
      _
    $region39: #{tpu_custom_call.1} parent=1 // pred_check_branch
      %98 = sbr.rel (0) target = $region41
    $region40: #{tpu_custom_call.1} parent=1 // pred_region
      %99 = dma.done [#allocation7], 2048
    $region41: #{tpu_custom_call.1} parent=1 // pred_fallthru
      _
    // Predicated region
    $region42: #{tpu_custom_call.1} parent=1 // pred_check
      _
    $region43: #{tpu_custom_call.1} parent=1 // pred_check_branch
      %101 = sbr.rel (0) target = $region45
    $region44: #{tpu_custom_call.1} parent=1 // pred_region
      %102 = dma.done [#allocation10], 1024
    $region45: #{tpu_custom_call.1} parent=1 // pred_fallthru
      _
    // Predicated region
    $region46: #{tpu_custom_call.1} parent=1 // pred_check
      _
    $region47: #{tpu_custom_call.1} parent=1 // pred_check_branch
      %104 = sbr.rel (0) target = $region49
    $region48: #{tpu_custom_call.1} parent=1 // pred_region
      %105 = dma.done [#allocation10], 1024
    $region49: #{tpu_custom_call.1} parent=1 // pred_fallthru
      _
    // Predicated region
    $region50: #{tpu_custom_call.1} parent=1 // pred_check
      _
    $region51: #{tpu_custom_call.1} parent=1 // pred_check_branch
      %107 = sbr.rel (0) target = $region53
    $region52: #{tpu_custom_call.1} parent=1 // pred_region
      %108 = dma.done [#allocation13], 1024
    $region53: #{tpu_custom_call.1} parent=1 // pred_fallthru
      _
    %p110 = scmp.eq.s32.totalorder 0, 0
    // Predicated region
    $region54: #{tpu_custom_call.1} parent=1 // pred_check
      %p111 = pneg %p110
    $region55: #{tpu_custom_call.1} parent=1 // pred_check_branch
      %113 = sbr.rel (%p111) target = $region57
    $region56: #{tpu_custom_call.1} parent=1 // pred_region
      %114 = vst [vmem:[#allocation2] sm:$0xff] 0.0
      %115 = vst [vmem:[#allocation2 + $0x8] sm:$0xff] 0.0
      %116 = vst [vmem:[#allocation2 + $0x10] sm:$0xff] 0.0
      %117 = vst [vmem:[#allocation2 + $0x18] sm:$0xff] 0.0
      %118 = vst [vmem:[#allocation2 + $0x20] sm:$0xff] 0.0
      %119 = vst [vmem:[#allocation2 + $0x28] sm:$0xff] 0.0
      %120 = vst [vmem:[#allocation2 + $0x30] sm:$0xff] 0.0
      %121 = vst [vmem:[#allocation2 + $0x38] sm:$0xff] 0.0
      %122 = vst [vmem:[#allocation2 + $0x40] sm:$0xff] 0.0
      %123 = vst [vmem:[#allocation2 + $0x48] sm:$0xff] 0.0
      %124 = vst [vmem:[#allocation2 + $0x50] sm:$0xff] 0.0
      %125 = vst [vmem:[#allocation2 + $0x58] sm:$0xff] 0.0
      %126 = vst [vmem:[#allocation2 + $0x60] sm:$0xff] 0.0
      %127 = vst [vmem:[#allocation2 + $0x68] sm:$0xff] 0.0
      %128 = vst [vmem:[#allocation2 + $0x70] sm:$0xff] 0.0
      %129 = vst [vmem:[#allocation2 + $0x78] sm:$0xff] 0.0
    $region57: #{tpu_custom_call.1} parent=1 // pred_fallthru
      _
    %v130 = vld [vmem:[#allocation2] sm:$0xff]
    %v131 = vld [vmem:[#allocation2 + $0x8] sm:$0xff]
    %v132 = vld [vmem:[#allocation2 + $0x10] sm:$0xff]
    %v133 = vld [vmem:[#allocation2 + $0x18] sm:$0xff]
    %v134 = vld [vmem:[#allocation2 + $0x20] sm:$0xff]
    %v135 = vld [vmem:[#allocation2 + $0x28] sm:$0xff]
    %v136 = vld [vmem:[#allocation2 + $0x30] sm:$0xff]
    %v137 = vld [vmem:[#allocation2 + $0x38] sm:$0xff]
    %v138 = vld [vmem:[#allocation2 + $0x40] sm:$0xff]
    %v139 = vld [vmem:[#allocation2 + $0x48] sm:$0xff]
    %v140 = vld [vmem:[#allocation2 + $0x50] sm:$0xff]
    %v141 = vld [vmem:[#allocation2 + $0x58] sm:$0xff]
    %v142 = vld [vmem:[#allocation2 + $0x60] sm:$0xff]
    %v143 = vld [vmem:[#allocation2 + $0x68] sm:$0xff]
    %v144 = vld [vmem:[#allocation2 + $0x70] sm:$0xff]
    %v145 = vld [vmem:[#allocation2 + $0x78] sm:$0xff]
    %v146 = vld [vmem:[#allocation3] sm:$0xf]
    %v147 = vld [vmem:[#allocation3 + $0x4] sm:$0xf]
    %v148 = vld [vmem:[#allocation3 + $0x8] sm:$0xf]
    %v149 = vld [vmem:[#allocation3 + $0xc] sm:$0xf]
    %v150 = vld [vmem:[#allocation3 + $0x10] sm:$0xf]
    %v151 = vld [vmem:[#allocation3 + $0x14] sm:$0xf]
    %v152 = vld [vmem:[#allocation3 + $0x18] sm:$0xf]
    %v153 = vld [vmem:[#allocation3 + $0x1c] sm:$0xf]
    %v154 = vld [vmem:[#allocation3 + $0x20] sm:$0xf]
    %v155 = vld [vmem:[#allocation3 + $0x24] sm:$0xf]
    %v156 = vld [vmem:[#allocation3 + $0x28] sm:$0xf]
    %v157 = vld [vmem:[#allocation3 + $0x2c] sm:$0xf]
    %v158 = vld [vmem:[#allocation3 + $0x30] sm:$0xf]
    %v159 = vld [vmem:[#allocation3 + $0x34] sm:$0xf]
    %v160 = vld [vmem:[#allocation3 + $0x38] sm:$0xf]
    %v161 = vld [vmem:[#allocation3 + $0x3c] sm:$0xf]
    %v162 = vld [vmem:[#allocation6] sm:$0xf]
    %v163 = vld [vmem:[#allocation6 + $0x4] sm:$0xf]
    %v164 = vld [vmem:[#allocation6 + $0x8] sm:$0xf]
    %v165 = vld [vmem:[#allocation6 + $0xc] sm:$0xf]
    %v166 = vld [vmem:[#allocation6 + $0x10] sm:$0xf]
    %v167 = vld [vmem:[#allocation6 + $0x14] sm:$0xf]
    %v168 = vld [vmem:[#allocation6 + $0x18] sm:$0xf]
    %v169 = vld [vmem:[#allocation6 + $0x1c] sm:$0xf]
    %v170 = vld [vmem:[#allocation6 + $0x20] sm:$0xf]
    %v171 = vld [vmem:[#allocation6 + $0x24] sm:$0xf]
    %v172 = vld [vmem:[#allocation6 + $0x28] sm:$0xf]
    %v173 = vld [vmem:[#allocation6 + $0x2c] sm:$0xf]
    %v174 = vld [vmem:[#allocation6 + $0x30] sm:$0xf]
    %v175 = vld [vmem:[#allocation6 + $0x34] sm:$0xf]
    %v176 = vld [vmem:[#allocation6 + $0x38] sm:$0xf]
    %v177 = vld [vmem:[#allocation6 + $0x3c] sm:$0xf]
    %v194 = vunpack.c.l.b16 %v146
    %v195 = vunpack.c.l.b16 %v147
    %v196 = vunpack.c.l.b16 %v148
    %v197 = vunpack.c.l.b16 %v149
    %v198 = vunpack.c.l.b16 %v150
    %v199 = vunpack.c.l.b16 %v151
    %v200 = vunpack.c.l.b16 %v152
    %v201 = vunpack.c.l.b16 %v153
    %v202 = vunpack.c.l.b16 %v154
    %v203 = vunpack.c.l.b16 %v155
    %v204 = vunpack.c.l.b16 %v156
    %v205 = vunpack.c.l.b16 %v157
    %v206 = vunpack.c.l.b16 %v158
    %v207 = vunpack.c.l.b16 %v159
    %v208 = vunpack.c.l.b16 %v160
    %v209 = vunpack.c.l.b16 %v161
    %v210 = vpack.c.b16 %v195, %v194
    %v211 = vpack.c.b16 %v197, %v196
    %v212 = vpack.c.b16 %v199, %v198
    %v213 = vpack.c.b16 %v201, %v200
    %v214 = vpack.c.b16 %v203, %v202
    %v215 = vpack.c.b16 %v205, %v204
    %v216 = vpack.c.b16 %v207, %v206
    %v217 = vpack.c.b16 %v209, %v208
    %v242 = vunpack.c.l.b16 %v162
    %v243 = vunpack.c.l.b16 %v163
    %v244 = vunpack.c.l.b16 %v164
    %v245 = vunpack.c.l.b16 %v165
    %v246 = vunpack.c.l.b16 %v166
    %v247 = vunpack.c.l.b16 %v167
    %v248 = vunpack.c.l.b16 %v168
    %v249 = vunpack.c.l.b16 %v169
    %v250 = vunpack.c.l.b16 %v170
    %v251 = vunpack.c.l.b16 %v171
    %v252 = vunpack.c.l.b16 %v172
    %v253 = vunpack.c.l.b16 %v173
    %v254 = vunpack.c.l.b16 %v174
    %v255 = vunpack.c.l.b16 %v175
    %v256 = vunpack.c.l.b16 %v176
    %v257 = vunpack.c.l.b16 %v177
    %v258 = vpack.c.b16 %v243, %v242
    %v259 = vpack.c.b16 %v245, %v244
    %v260 = vpack.c.b16 %v247, %v246
    %v261 = vpack.c.b16 %v249, %v248
    %v262 = vpack.c.b16 %v251, %v250
    %v263 = vpack.c.b16 %v253, %v252
    %v264 = vpack.c.b16 %v255, %v254
    %v265 = vpack.c.b16 %v257, %v256
    %274 = vmatprep.subr.bf16.mxu0 0
    %275 = vmatpush1.bf16.msra.mxu0 %v258
    %276 = vmatprep.subr.bf16.mxu0 0
    %277 = vmatpush1.bf16.msra.mxu0 %v259
    %278 = vmatprep.subr.bf16.mxu0 0
    %279 = vmatpush1.bf16.msra.mxu0 %v260
    %280 = vmatprep.subr.bf16.mxu0 0
    %281 = vmatpush1.bf16.msra.mxu0 %v261
    %282 = vmatprep.subr.bf16.mxu0 0
    %283 = vmatpush1.bf16.msra.mxu0 %v262
    %284 = vmatprep.subr.bf16.mxu0 0
    %285 = vmatpush1.bf16.msra.mxu0 %v263
    %286 = vmatprep.subr.bf16.mxu0 0
    %287 = vmatpush1.bf16.msra.mxu0 %v264
    %288 = vmatprep.subr.bf16.mxu0 0
    %289 = vmatpush1.bf16.msra.mxu0 %v265
    %290 = vmatprep.subr.bf16.mxu0 0
    %291 = vmatpush1.bf16.msra.mxu0 0
    %292 = vmatprep.subr.bf16.mxu0 0
    %293 = vmatpush1.bf16.msra.mxu0 0
    %294 = vmatprep.subr.bf16.mxu0 0
    %295 = vmatpush1.bf16.msra.mxu0 0
    %296 = vmatprep.subr.bf16.mxu0 0
    %297 = vmatpush1.bf16.msra.mxu0 0
    %298 = vmatprep.subr.bf16.mxu0 0
    %299 = vmatpush1.bf16.msra.mxu0 0
    %300 = vmatprep.subr.bf16.mxu0 0
    %301 = vmatpush1.bf16.msra.mxu0 0
    %302 = vmatprep.subr.bf16.mxu0 0
    %303 = vmatpush1.bf16.msra.mxu0 0
    %304 = vmatprep.subr.bf16.mxu0 0
    %305 = vmatpush1.bf16.msra.mxu0 0
    %306 = vmatprep.mubr.bf16.mxu0 0
    %307 = vmatmul.mubr.bf16.gmra.mrb[0].mxu0 %v210
    %v308 = vpop.f32.mrb[0].mxu0
    %v309 = vadd.f32 0.0, %v308
    %v310 = vpop.f32.mrb[0].mxu0
    %v311 = vpop.f32.mrb[0].mxu0
    %v312 = vadd.f32 0.0, %v311
    %v313 = vpop.f32.mrb[0].mxu0
    %314 = vmatprep.mubr.bf16.mxu0 0
    %315 = vmatmul.mubr.bf16.gmra.mrb[0].mxu0 %v211
    %v316 = vpop.f32.mrb[0].mxu0
    %v317 = vadd.f32 0.0, %v316
    %v318 = vpop.f32.mrb[0].mxu0
    %v319 = vpop.f32.mrb[0].mxu0
    %v320 = vadd.f32 0.0, %v319
    %v321 = vpop.f32.mrb[0].mxu0
    %322 = vmatprep.mubr.bf16.mxu0 0
    %323 = vmatmul.mubr.bf16.gmra.mrb[0].mxu0 %v212
    %v324 = vpop.f32.mrb[0].mxu0
    %v325 = vadd.f32 0.0, %v324
    %v326 = vpop.f32.mrb[0].mxu0
    %v327 = vpop.f32.mrb[0].mxu0
    %v328 = vadd.f32 0.0, %v327
    %v329 = vpop.f32.mrb[0].mxu0
    %330 = vmatprep.mubr.bf16.mxu0 0
    %331 = vmatmul.mubr.bf16.gmra.mrb[0].mxu0 %v213
    %v332 = vpop.f32.mrb[0].mxu0
    %v333 = vadd.f32 0.0, %v332
    %v334 = vpop.f32.mrb[0].mxu0
    %v335 = vpop.f32.mrb[0].mxu0
    %v336 = vadd.f32 0.0, %v335
    %v337 = vpop.f32.mrb[0].mxu0
    %338 = vmatprep.mubr.bf16.mxu0 0
    %339 = vmatmul.mubr.bf16.gmra.mrb[0].mxu0 %v214
    %v340 = vpop.f32.mrb[0].mxu0
    %v341 = vadd.f32 0.0, %v340
    %v342 = vpop.f32.mrb[0].mxu0
    %v343 = vpop.f32.mrb[0].mxu0
    %v344 = vadd.f32 0.0, %v343
    %v345 = vpop.f32.mrb[0].mxu0
    %346 = vmatprep.mubr.bf16.mxu0 0
    %347 = vmatmul.mubr.bf16.gmra.mrb[0].mxu0 %v215
    %v348 = vpop.f32.mrb[0].mxu0
    %v349 = vadd.f32 0.0, %v348
    %v350 = vpop.f32.mrb[0].mxu0
    %v351 = vpop.f32.mrb[0].mxu0
    %v352 = vadd.f32 0.0, %v351
    %v353 = vpop.f32.mrb[0].mxu0
    %354 = vmatprep.mubr.bf16.mxu0 0
    %355 = vmatmul.mubr.bf16.gmra.mrb[0].mxu0 %v216
    %v356 = vpop.f32.mrb[0].mxu0
    %v357 = vadd.f32 0.0, %v356
    %v358 = vpop.f32.mrb[0].mxu0
    %v359 = vpop.f32.mrb[0].mxu0
    %v360 = vadd.f32 0.0, %v359
    %v361 = vpop.f32.mrb[0].mxu0
    %362 = vmatprep.mubr.bf16.mxu0 0
    %363 = vmatmul.mubr.bf16.gmra.mrb[0].mxu0 %v217
    %v364 = vpop.f32.mrb[0].mxu0
    %v365 = vadd.f32 0.0, %v364
    %v366 = vpop.f32.mrb[0].mxu0
    %v367 = vpop.f32.mrb[0].mxu0
    %v368 = vadd.f32 0.0, %v367
    %v369 = vpop.f32.mrb[0].mxu0
    %370 = vdwg.mxu0
    %v371 = vadd.f32 %v130, %v309
    %v372 = vadd.f32 %v131, %v312
    %v373 = vadd.f32 %v132, %v317
    %v374 = vadd.f32 %v133, %v320
    %v375 = vadd.f32 %v134, %v325
    %v376 = vadd.f32 %v135, %v328
    %v377 = vadd.f32 %v136, %v333
    %v378 = vadd.f32 %v137, %v336
    %v379 = vadd.f32 %v138, %v341
    %v380 = vadd.f32 %v139, %v344
    %v381 = vadd.f32 %v140, %v349
    %v382 = vadd.f32 %v141, %v352
    %v383 = vadd.f32 %v142, %v357
    %v384 = vadd.f32 %v143, %v360
    %v385 = vadd.f32 %v144, %v365
    %v386 = vadd.f32 %v145, %v368
    %387 = vst [vmem:[#allocation2] sm:$0xff] %v371
    %388 = vst [vmem:[#allocation2 + $0x8] sm:$0xff] %v372
    %389 = vst [vmem:[#allocation2 + $0x10] sm:$0xff] %v373
    %390 = vst [vmem:[#allocation2 + $0x18] sm:$0xff] %v374
    %391 = vst [vmem:[#allocation2 + $0x20] sm:$0xff] %v375
    %392 = vst [vmem:[#allocation2 + $0x28] sm:$0xff] %v376
    %393 = vst [vmem:[#allocation2 + $0x30] sm:$0xff] %v377
    %394 = vst [vmem:[#allocation2 + $0x38] sm:$0xff] %v378
    %395 = vst [vmem:[#allocation2 + $0x40] sm:$0xff] %v379
    %396 = vst [vmem:[#allocation2 + $0x48] sm:$0xff] %v380
    %397 = vst [vmem:[#allocation2 + $0x50] sm:$0xff] %v381
    %398 = vst [vmem:[#allocation2 + $0x58] sm:$0xff] %v382
    %399 = vst [vmem:[#allocation2 + $0x60] sm:$0xff] %v383
    %400 = vst [vmem:[#allocation2 + $0x68] sm:$0xff] %v384
    %401 = vst [vmem:[#allocation2 + $0x70] sm:$0xff] %v385
    %402 = vst [vmem:[#allocation2 + $0x78] sm:$0xff] %v386
    // Predicated region
    $region58: #{tpu_custom_call.1} parent=1 // pred_check
      %p403 = pneg %p110
    $region59: #{tpu_custom_call.1} parent=1 // pred_check_branch
      %405 = sbr.rel (%p403) target = $region61
    $region60: #{tpu_custom_call.1} parent=1 // pred_region
      %v406 = vld [vmem:[#allocation8] sm:$0xff]
      %v407 = vld [vmem:[#allocation8 + $0x8] sm:$0xff]
      %v408 = vld [vmem:[#allocation8 + $0x10] sm:$0xff]
      %v409 = vld [vmem:[#allocation8 + $0x18] sm:$0xff]
      %v410 = vld [vmem:[#allocation8 + $0x20] sm:$0xff]
      %v411 = vld [vmem:[#allocation8 + $0x28] sm:$0xff]
      %v412 = vld [vmem:[#allocation8 + $0x30] sm:$0xff]
      %v413 = vld [vmem:[#allocation8 + $0x38] sm:$0xff]
      %v414 = vld [vmem:[#allocation8 + $0x40] sm:$0xff]
      %v415 = vld [vmem:[#allocation8 + $0x48] sm:$0xff]
      %v416 = vld [vmem:[#allocation8 + $0x50] sm:$0xff]
      %v417 = vld [vmem:[#allocation8 + $0x58] sm:$0xff]
      %v418 = vld [vmem:[#allocation8 + $0x60] sm:$0xff]
      %v419 = vld [vmem:[#allocation8 + $0x68] sm:$0xff]
      %v420 = vld [vmem:[#allocation8 + $0x70] sm:$0xff]
      %v421 = vld [vmem:[#allocation8 + $0x78] sm:$0xff]
      %v422 = vld [vmem:[#allocation9] sm:$0xf]
      %v423 = vld [vmem:[#allocation9 + $0x4] sm:$0xf]
      %v424 = vld [vmem:[#allocation9 + $0x8] sm:$0xf]
      %v425 = vld [vmem:[#allocation9 + $0xc] sm:$0xf]
      %v426 = vld [vmem:[#allocation9 + $0x10] sm:$0xf]
      %v427 = vld [vmem:[#allocation9 + $0x14] sm:$0xf]
      %v428 = vld [vmem:[#allocation9 + $0x18] sm:$0xf]
      %v429 = vld [vmem:[#allocation9 + $0x1c] sm:$0xf]
      %v430 = vld [vmem:[#allocation9 + $0x20] sm:$0xf]
      %v431 = vld [vmem:[#allocation9 + $0x24] sm:$0xf]
      %v432 = vld [vmem:[#allocation9 + $0x28] sm:$0xf]
      %v433 = vld [vmem:[#allocation9 + $0x2c] sm:$0xf]
      %v434 = vld [vmem:[#allocation9 + $0x30] sm:$0xf]
      %v435 = vld [vmem:[#allocation9 + $0x34] sm:$0xf]
      %v436 = vld [vmem:[#allocation9 + $0x38] sm:$0xf]
      %v437 = vld [vmem:[#allocation9 + $0x3c] sm:$0xf]
      %v438 = vld [vmem:[#allocation2] sm:$0xff]
      %v439 = vld [vmem:[#allocation2 + $0x8] sm:$0xff]
      %v440 = vld [vmem:[#allocation2 + $0x10] sm:$0xff]
      %v441 = vld [vmem:[#allocation2 + $0x18] sm:$0xff]
      %v442 = vld [vmem:[#allocation2 + $0x20] sm:$0xff]
      %v443 = vld [vmem:[#allocation2 + $0x28] sm:$0xff]
      %v444 = vld [vmem:[#allocation2 + $0x30] sm:$0xff]
      %v445 = vld [vmem:[#allocation2 + $0x38] sm:$0xff]
      %v446 = vld [vmem:[#allocation2 + $0x40] sm:$0xff]
      %v447 = vld [vmem:[#allocation2 + $0x48] sm:$0xff]
      %v448 = vld [vmem:[#allocation2 + $0x50] sm:$0xff]
      %v449 = vld [vmem:[#allocation2 + $0x58] sm:$0xff]
      %v450 = vld [vmem:[#allocation2 + $0x60] sm:$0xff]
      %v451 = vld [vmem:[#allocation2 + $0x68] sm:$0xff]
      %v452 = vld [vmem:[#allocation2 + $0x70] sm:$0xff]
      %v453 = vld [vmem:[#allocation2 + $0x78] sm:$0xff]
      %v454 = vpack.c.bf16 %v407, %v406
      %v455 = vpack.c.bf16 %v409, %v408
      %v456 = vpack.c.bf16 %v411, %v410
      %v457 = vpack.c.bf16 %v413, %v412
      %v458 = vpack.c.bf16 %v415, %v414
      %v459 = vpack.c.bf16 %v417, %v416
      %v460 = vpack.c.bf16 %v419, %v418
      %v461 = vpack.c.bf16 %v421, %v420
      %v462 = vpack.c.bf16 %v439, %v438
      %v463 = vpack.c.bf16 %v441, %v440
      %v464 = vpack.c.bf16 %v443, %v442
      %v465 = vpack.c.bf16 %v445, %v444
      %v466 = vpack.c.bf16 %v447, %v446
      %v467 = vpack.c.bf16 %v449, %v448
      %v468 = vpack.c.bf16 %v451, %v450
      %v469 = vpack.c.bf16 %v453, %v452
      %v470 = vld [vmem:[#allocation11] sm:$0xf]
      %v471 = vld [vmem:[#allocation11 + $0x4] sm:$0xf]
      %v472 = vld [vmem:[#allocation11 + $0x8] sm:$0xf]
      %v473 = vld [vmem:[#allocation11 + $0xc] sm:$0xf]
      %v474 = vld [vmem:[#allocation11 + $0x10] sm:$0xf]
      %v475 = vld [vmem:[#allocation11 + $0x14] sm:$0xf]
      %v476 = vld [vmem:[#allocation11 + $0x18] sm:$0xf]
      %v477 = vld [vmem:[#allocation11 + $0x1c] sm:$0xf]
      %v478 = vld [vmem:[#allocation11 + $0x20] sm:$0xf]
      %v479 = vld [vmem:[#allocation11 + $0x24] sm:$0xf]
      %v480 = vld [vmem:[#allocation11 + $0x28] sm:$0xf]
      %v481 = vld [vmem:[#allocation11 + $0x2c] sm:$0xf]
      %v482 = vld [vmem:[#allocation11 + $0x30] sm:$0xf]
      %v483 = vld [vmem:[#allocation11 + $0x34] sm:$0xf]
      %v484 = vld [vmem:[#allocation11 + $0x38] sm:$0xf]
      %v485 = vld [vmem:[#allocation11 + $0x3c] sm:$0xf]
      %v502 = vunpack.c.l.b16 %v470
      %v503 = vunpack.c.l.b16 %v471
      %v504 = vunpack.c.l.b16 %v472
      %v505 = vunpack.c.l.b16 %v473
      %v506 = vunpack.c.l.b16 %v474
      %v507 = vunpack.c.l.b16 %v475
      %v508 = vunpack.c.l.b16 %v476
      %v509 = vunpack.c.l.b16 %v477
      %v510 = vunpack.c.l.b16 %v478
      %v511 = vunpack.c.l.b16 %v479
      %v512 = vunpack.c.l.b16 %v480
      %v513 = vunpack.c.l.b16 %v481
      %v514 = vunpack.c.l.b16 %v482
      %v515 = vunpack.c.l.b16 %v483
      %v516 = vunpack.c.l.b16 %v484
      %v517 = vunpack.c.l.b16 %v485
      %v518 = vpack.c.b16 %v503, %v502
      %v519 = vpack.c.b16 %v505, %v504
      %v520 = vpack.c.b16 %v507, %v506
      %v521 = vpack.c.b16 %v509, %v508
      %v522 = vpack.c.b16 %v511, %v510
      %v523 = vpack.c.b16 %v513, %v512
      %v524 = vpack.c.b16 %v515, %v514
      %v525 = vpack.c.b16 %v517, %v516
      %534 = vmatprep.subr.bf16.mxu0 0
      %535 = vmatpush1.bf16.msra.mxu0 %v518
      %536 = vmatprep.subr.bf16.mxu0 0
      %537 = vmatpush1.bf16.msra.mxu0 %v519
      %538 = vmatprep.subr.bf16.mxu0 0
      %539 = vmatpush1.bf16.msra.mxu0 %v520
      %540 = vmatprep.subr.bf16.mxu0 0
      %541 = vmatpush1.bf16.msra.mxu0 %v521
      %542 = vmatprep.subr.bf16.mxu0 0
      %543 = vmatpush1.bf16.msra.mxu0 %v522
      %544 = vmatprep.subr.bf16.mxu0 0
      %545 = vmatpush1.bf16.msra.mxu0 %v523
      %546 = vmatprep.subr.bf16.mxu0 0
      %547 = vmatpush1.bf16.msra.mxu0 %v524
      %548 = vmatprep.subr.bf16.mxu0 0
      %549 = vmatpush1.bf16.msra.mxu0 %v525
      %550 = vmatprep.subr.bf16.mxu0 0
      %551 = vmatpush1.bf16.msra.mxu0 0
      %552 = vmatprep.subr.bf16.mxu0 0
      %553 = vmatpush1.bf16.msra.mxu0 0
      %554 = vmatprep.subr.bf16.mxu0 0
      %555 = vmatpush1.bf16.msra.mxu0 0
      %556 = vmatprep.subr.bf16.mxu0 0
      %557 = vmatpush1.bf16.msra.mxu0 0
      %558 = vmatprep.subr.bf16.mxu0 0
      %559 = vmatpush1.bf16.msra.mxu0 0
      %560 = vmatprep.subr.bf16.mxu0 0
      %561 = vmatpush1.bf16.msra.mxu0 0
      %562 = vmatprep.subr.bf16.mxu0 0
      %563 = vmatpush1.bf16.msra.mxu0 0
      %564 = vmatprep.subr.bf16.mxu0 0
      %565 = vmatpush1.bf16.msra.mxu0 0
      %566 = vmatprep.mubr.bf16.mxu0 0
      %567 = vmatmul.mubr.bf16.gmra.mrb[0].mxu0 %v462
      %v568 = vpop.f32.mrb[0].mxu0
      %v569 = vadd.f32 0.0, %v568
      %v570 = vpop.f32.mrb[0].mxu0
      %v571 = vpop.f32.mrb[0].mxu0
      %v572 = vadd.f32 0.0, %v571
      %v573 = vpop.f32.mrb[0].mxu0
      %574 = vmatprep.mubr.bf16.mxu0 0
      %575 = vmatmul.mubr.bf16.gmra.mrb[0].mxu0 %v463
      %v576 = vpop.f32.mrb[0].mxu0
      %v577 = vadd.f32 0.0, %v576
      %v578 = vpop.f32.mrb[0].mxu0
      %v579 = vpop.f32.mrb[0].mxu0
      %v580 = vadd.f32 0.0, %v579
      %v581 = vpop.f32.mrb[0].mxu0
      %582 = vmatprep.mubr.bf16.mxu0 0
      %583 = vmatmul.mubr.bf16.gmra.mrb[0].mxu0 %v464
      %v584 = vpop.f32.mrb[0].mxu0
      %v585 = vadd.f32 0.0, %v584
      %v586 = vpop.f32.mrb[0].mxu0
      %v587 = vpop.f32.mrb[0].mxu0
      %v588 = vadd.f32 0.0, %v587
      %v589 = vpop.f32.mrb[0].mxu0
      %590 = vmatprep.mubr.bf16.mxu0 0
      %591 = vmatmul.mubr.bf16.gmra.mrb[0].mxu0 %v465
      %v592 = vpop.f32.mrb[0].mxu0
      %v593 = vadd.f32 0.0, %v592
      %v594 = vpop.f32.mrb[0].mxu0
      %v595 = vpop.f32.mrb[0].mxu0
      %v596 = vadd.f32 0.0, %v595
      %v597 = vpop.f32.mrb[0].mxu0
      %598 = vmatprep.mubr.bf16.mxu0 0
      %599 = vmatmul.mubr.bf16.gmra.mrb[0].mxu0 %v466
      %v600 = vpop.f32.mrb[0].mxu0
      %v601 = vadd.f32 0.0, %v600
      %v602 = vpop.f32.mrb[0].mxu0
      %v603 = vpop.f32.mrb[0].mxu0
      %v604 = vadd.f32 0.0, %v603
      %v605 = vpop.f32.mrb[0].mxu0
      %606 = vmatprep.mubr.bf16.mxu0 0
      %607 = vmatmul.mubr.bf16.gmra.mrb[0].mxu0 %v467
      %v608 = vpop.f32.mrb[0].mxu0
      %v609 = vadd.f32 0.0, %v608
      %v610 = vpop.f32.mrb[0].mxu0
      %v611 = vpop.f32.mrb[0].mxu0
      %v612 = vadd.f32 0.0, %v611
      %v613 = vpop.f32.mrb[0].mxu0
      %614 = vmatprep.mubr.bf16.mxu0 0
      %615 = vmatmul.mubr.bf16.gmra.mrb[0].mxu0 %v468
      %v616 = vpop.f32.mrb[0].mxu0
      %v617 = vadd.f32 0.0, %v616
      %v618 = vpop.f32.mrb[0].mxu0
      %v619 = vpop.f32.mrb[0].mxu0
      %v620 = vadd.f32 0.0, %v619
      %v621 = vpop.f32.mrb[0].mxu0
      %622 = vmatprep.mubr.bf16.mxu0 0
      %623 = vmatmul.mubr.bf16.gmra.mrb[0].mxu0 %v469
      %v624 = vpop.f32.mrb[0].mxu0
      %v625 = vadd.f32 0.0, %v624
      %v626 = vpop.f32.mrb[0].mxu0
      %v627 = vpop.f32.mrb[0].mxu0
      %v628 = vadd.f32 0.0, %v627
      %v629 = vpop.f32.mrb[0].mxu0
      %630 = vdwg.mxu0
      %v647 = vunpack.c.l.b16 %v422
      %v648 = vunpack.c.l.b16 %v423
      %v649 = vunpack.c.l.b16 %v424
      %v650 = vunpack.c.l.b16 %v425
      %v651 = vunpack.c.l.b16 %v426
      %v652 = vunpack.c.l.b16 %v427
      %v653 = vunpack.c.l.b16 %v428
      %v654 = vunpack.c.l.b16 %v429
      %v655 = vunpack.c.l.b16 %v430
      %v656 = vunpack.c.l.b16 %v431
      %v657 = vunpack.c.l.b16 %v432
      %v658 = vunpack.c.l.b16 %v433
      %v659 = vunpack.c.l.b16 %v434
      %v660 = vunpack.c.l.b16 %v435
      %v661 = vunpack.c.l.b16 %v436
      %v662 = vunpack.c.l.b16 %v437
      %v663 = vpack.c.b16 %v648, %v647
      %v664 = vpack.c.b16 %v650, %v649
      %v665 = vpack.c.b16 %v652, %v651
      %v666 = vpack.c.b16 %v654, %v653
      %v667 = vpack.c.b16 %v656, %v655
      %v668 = vpack.c.b16 %v658, %v657
      %v669 = vpack.c.b16 %v660, %v659
      %v670 = vpack.c.b16 %v662, %v661
      %679 = vmatprep.subr.bf16.mxu0 0
      %680 = vmatpush1.bf16.msra.mxu0 %v663
      %681 = vmatprep.subr.bf16.mxu0 0
      %682 = vmatpush1.bf16.msra.mxu0 %v664
      %683 = vmatprep.subr.bf16.mxu0 0
      %684 = vmatpush1.bf16.msra.mxu0 %v665
      %685 = vmatprep.subr.bf16.mxu0 0
      %686 = vmatpush1.bf16.msra.mxu0 %v666
      %687 = vmatprep.subr.bf16.mxu0 0
      %688 = vmatpush1.bf16.msra.mxu0 %v667
      %689 = vmatprep.subr.bf16.mxu0 0
      %690 = vmatpush1.bf16.msra.mxu0 %v668
      %691 = vmatprep.subr.bf16.mxu0 0
      %692 = vmatpush1.bf16.msra.mxu0 %v669
      %693 = vmatprep.subr.bf16.mxu0 0
      %694 = vmatpush1.bf16.msra.mxu0 %v670
      %695 = vmatprep.subr.bf16.mxu0 0
      %696 = vmatpush1.bf16.msra.mxu0 0
      %697 = vmatprep.subr.bf16.mxu0 0
      %698 = vmatpush1.bf16.msra.mxu0 0
      %699 = vmatprep.subr.bf16.mxu0 0
      %700 = vmatpush1.bf16.msra.mxu0 0
      %701 = vmatprep.subr.bf16.mxu0 0
      %702 = vmatpush1.bf16.msra.mxu0 0
      %703 = vmatprep.subr.bf16.mxu0 0
      %704 = vmatpush1.bf16.msra.mxu0 0
      %705 = vmatprep.subr.bf16.mxu0 0
      %706 = vmatpush1.bf16.msra.mxu0 0
      %707 = vmatprep.subr.bf16.mxu0 0
      %708 = vmatpush1.bf16.msra.mxu0 0
      %709 = vmatprep.subr.bf16.mxu0 0
      %710 = vmatpush1.bf16.msra.mxu0 0
      %711 = vmatprep.mubr.bf16.mxu0 0
      %712 = vmatmul.mubr.bf16.gmra.mrb[0].mxu0 %v454
      %v713 = vpop.f32.mrb[0].mxu0
      %v714 = vadd.f32 %v569, %v713
      %v715 = vpop.f32.mrb[0].mxu0
      %v716 = vpop.f32.mrb[0].mxu0
      %v717 = vadd.f32 %v572, %v716
      %v718 = vpop.f32.mrb[0].mxu0
      %719 = vmatprep.mubr.bf16.mxu0 0
      %720 = vmatmul.mubr.bf16.gmra.mrb[0].mxu0 %v455
      %v721 = vpop.f32.mrb[0].mxu0
      %v722 = vadd.f32 %v577, %v721
      %v723 = vpop.f32.mrb[0].mxu0
      %v724 = vpop.f32.mrb[0].mxu0
      %v725 = vadd.f32 %v580, %v724
      %v726 = vpop.f32.mrb[0].mxu0
      %727 = vmatprep.mubr.bf16.mxu0 0
      %728 = vmatmul.mubr.bf16.gmra.mrb[0].mxu0 %v456
      %v729 = vpop.f32.mrb[0].mxu0
      %v730 = vadd.f32 %v585, %v729
      %v731 = vpop.f32.mrb[0].mxu0
      %v732 = vpop.f32.mrb[0].mxu0
      %v733 = vadd.f32 %v588, %v732
      %v734 = vpop.f32.mrb[0].mxu0
      %735 = vmatprep.mubr.bf16.mxu0 0
      %736 = vmatmul.mubr.bf16.gmra.mrb[0].mxu0 %v457
      %v737 = vpop.f32.mrb[0].mxu0
      %v738 = vadd.f32 %v593, %v737
      %v739 = vpop.f32.mrb[0].mxu0
      %v740 = vpop.f32.mrb[0].mxu0
      %v741 = vadd.f32 %v596, %v740
      %v742 = vpop.f32.mrb[0].mxu0
      %743 = vmatprep.mubr.bf16.mxu0 0
      %744 = vmatmul.mubr.bf16.gmra.mrb[0].mxu0 %v458
      %v745 = vpop.f32.mrb[0].mxu0
      %v746 = vadd.f32 %v601, %v745
      %v747 = vpop.f32.mrb[0].mxu0
      %v748 = vpop.f32.mrb[0].mxu0
      %v749 = vadd.f32 %v604, %v748
      %v750 = vpop.f32.mrb[0].mxu0
      %751 = vmatprep.mubr.bf16.mxu0 0
      %752 = vmatmul.mubr.bf16.gmra.mrb[0].mxu0 %v459
      %v753 = vpop.f32.mrb[0].mxu0
      %v754 = vadd.f32 %v609, %v753
      %v755 = vpop.f32.mrb[0].mxu0
      %v756 = vpop.f32.mrb[0].mxu0
      %v757 = vadd.f32 %v612, %v756
      %v758 = vpop.f32.mrb[0].mxu0
      %759 = vmatprep.mubr.bf16.mxu0 0
      %760 = vmatmul.mubr.bf16.gmra.mrb[0].mxu0 %v460
      %v761 = vpop.f32.mrb[0].mxu0
      %v762 = vadd.f32 %v617, %v761
      %v763 = vpop.f32.mrb[0].mxu0
      %v764 = vpop.f32.mrb[0].mxu0
      %v765 = vadd.f32 %v620, %v764
      %v766 = vpop.f32.mrb[0].mxu0
      %767 = vmatprep.mubr.bf16.mxu0 0
      %768 = vmatmul.mubr.bf16.gmra.mrb[0].mxu0 %v461
      %v769 = vpop.f32.mrb[0].mxu0
      %v770 = vadd.f32 %v625, %v769
      %v771 = vpop.f32.mrb[0].mxu0
      %v772 = vpop.f32.mrb[0].mxu0
      %v773 = vadd.f32 %v628, %v772
      %v774 = vpop.f32.mrb[0].mxu0
      %775 = vdwg.mxu0
      %v776 = vld [vmem:[%s6] sm:$0x1]
      %v777 = vlaneseq
      %v778 = vshrl.u32 %v777, 7
      %v779 = vsub.s32 0, %v778
      %v780 = vrot.slane %v776, %v779
      %v781 = vadd.f32 %v714, %v780
      %v782 = vadd.f32 %v717, %v780
      %v783 = vadd.f32 %v722, %v780
      %v784 = vadd.f32 %v725, %v780
      %v785 = vadd.f32 %v730, %v780
      %v786 = vadd.f32 %v733, %v780
      %v787 = vadd.f32 %v738, %v780
      %v788 = vadd.f32 %v741, %v780
      %v789 = vadd.f32 %v746, %v780
      %v790 = vadd.f32 %v749, %v780
      %v791 = vadd.f32 %v754, %v780
      %v792 = vadd.f32 %v757, %v780
      %v793 = vadd.f32 %v762, %v780
      %v794 = vadd.f32 %v765, %v780
      %v795 = vadd.f32 %v770, %v780
      %v796 = vadd.f32 %v773, %v780
      %v797 = vmax.f32 %v781, 0.0
      %v798 = vmax.f32 %v782, 0.0
      %v799 = vmax.f32 %v783, 0.0
      %v800 = vmax.f32 %v784, 0.0
      %v801 = vmax.f32 %v785, 0.0
      %v802 = vmax.f32 %v786, 0.0
      %v803 = vmax.f32 %v787, 0.0
      %v804 = vmax.f32 %v788, 0.0
      %v805 = vmax.f32 %v789, 0.0
      %v806 = vmax.f32 %v790, 0.0
      %v807 = vmax.f32 %v791, 0.0
      %v808 = vmax.f32 %v792, 0.0
      %v809 = vmax.f32 %v793, 0.0
      %v810 = vmax.f32 %v794, 0.0
      %v811 = vmax.f32 %v795, 0.0
      %v812 = vmax.f32 %v796, 0.0
      %v813 = vpack.c.bf16 %v798, %v797
      %v814 = vpack.c.bf16 %v800, %v799
      %v815 = vpack.c.bf16 %v802, %v801
      %v816 = vpack.c.bf16 %v804, %v803
      %v817 = vpack.c.bf16 %v806, %v805
      %v818 = vpack.c.bf16 %v808, %v807
      %v819 = vpack.c.bf16 %v810, %v809
      %v820 = vpack.c.bf16 %v812, %v811
      %v821 = vld [vmem:[#allocation12] sm:$0xf]
      %v822 = vld [vmem:[#allocation12 + $0x4] sm:$0xf]
      %v823 = vld [vmem:[#allocation12 + $0x8] sm:$0xf]
      %v824 = vld [vmem:[#allocation12 + $0xc] sm:$0xf]
      %v825 = vld [vmem:[#allocation12 + $0x10] sm:$0xf]
      %v826 = vld [vmem:[#allocation12 + $0x14] sm:$0xf]
      %v827 = vld [vmem:[#allocation12 + $0x18] sm:$0xf]
      %v828 = vld [vmem:[#allocation12 + $0x1c] sm:$0xf]
      %v829 = vld [vmem:[#allocation12 + $0x20] sm:$0xf]
      %v830 = vld [vmem:[#allocation12 + $0x24] sm:$0xf]
      %v831 = vld [vmem:[#allocation12 + $0x28] sm:$0xf]
      %v832 = vld [vmem:[#allocation12 + $0x2c] sm:$0xf]
      %v833 = vld [vmem:[#allocation12 + $0x30] sm:$0xf]
      %v834 = vld [vmem:[#allocation12 + $0x34] sm:$0xf]
      %v835 = vld [vmem:[#allocation12 + $0x38] sm:$0xf]
      %v836 = vld [vmem:[#allocation12 + $0x3c] sm:$0xf]
      %v837 = vld [vmem:[%s6 + $0x1] sm:$0x1]
      %v838 = vlaneseq
      %v839 = vshrl.u32 %v838, 7
      %v840 = vsub.s32 0, %v839
      %v841 = vrot.slane %v837, %v840
      %v858 = vunpack.c.l.b16 %v821
      %v859 = vunpack.c.l.b16 %v822
      %v860 = vunpack.c.l.b16 %v823
      %v861 = vunpack.c.l.b16 %v824
      %v862 = vunpack.c.l.b16 %v825
      %v863 = vunpack.c.l.b16 %v826
      %v864 = vunpack.c.l.b16 %v827
      %v865 = vunpack.c.l.b16 %v828
      %v866 = vunpack.c.l.b16 %v829
      %v867 = vunpack.c.l.b16 %v830
      %v868 = vunpack.c.l.b16 %v831
      %v869 = vunpack.c.l.b16 %v832
      %v870 = vunpack.c.l.b16 %v833
      %v871 = vunpack.c.l.b16 %v834
      %v872 = vunpack.c.l.b16 %v835
      %v873 = vunpack.c.l.b16 %v836
      %v874 = vpack.c.b16 %v859, %v858
      %v875 = vpack.c.b16 %v861, %v860
      %v876 = vpack.c.b16 %v863, %v862
      %v877 = vpack.c.b16 %v865, %v864
      %v878 = vpack.c.b16 %v867, %v866
      %v879 = vpack.c.b16 %v869, %v868
      %v880 = vpack.c.b16 %v871, %v870
      %v881 = vpack.c.b16 %v873, %v872
      %890 = vmatprep.subr.bf16.mxu0 0
      %891 = vmatpush1.bf16.msra.mxu0 %v874
      %892 = vmatprep.subr.bf16.mxu0 0
      %893 = vmatpush1.bf16.msra.mxu0 %v875
      %894 = vmatprep.subr.bf16.mxu0 0
      %895 = vmatpush1.bf16.msra.mxu0 %v876
      %896 = vmatprep.subr.bf16.mxu0 0
      %897 = vmatpush1.bf16.msra.mxu0 %v877
      %898 = vmatprep.subr.bf16.mxu0 0
      %899 = vmatpush1.bf16.msra.mxu0 %v878
      %900 = vmatprep.subr.bf16.mxu0 0
      %901 = vmatpush1.bf16.msra.mxu0 %v879
      %902 = vmatprep.subr.bf16.mxu0 0
      %903 = vmatpush1.bf16.msra.mxu0 %v880
      %904 = vmatprep.subr.bf16.mxu0 0
      %905 = vmatpush1.bf16.msra.mxu0 %v881
      %906 = vmatprep.subr.bf16.mxu0 0
      %907 = vmatpush1.bf16.msra.mxu0 0
      %908 = vmatprep.subr.bf16.mxu0 0
      %909 = vmatpush1.bf16.msra.mxu0 0
      %910 = vmatprep.subr.bf16.mxu0 0
      %911 = vmatpush1.bf16.msra.mxu0 0
      %912 = vmatprep.subr.bf16.mxu0 0
      %913 = vmatpush1.bf16.msra.mxu0 0
      %914 = vmatprep.subr.bf16.mxu0 0
      %915 = vmatpush1.bf16.msra.mxu0 0
      %916 = vmatprep.subr.bf16.mxu0 0
      %917 = vmatpush1.bf16.msra.mxu0 0
      %918 = vmatprep.subr.bf16.mxu0 0
      %919 = vmatpush1.bf16.msra.mxu0 0
      %920 = vmatprep.subr.bf16.mxu0 0
      %921 = vmatpush1.bf16.msra.mxu0 0
      %922 = vmatprep.mubr.bf16.mxu0 0
      %923 = vmatmul.mubr.bf16.gmra.mrb[0].mxu0 %v813
      %v924 = vpop.f32.mrb[0].mxu0
      %v925 = vadd.f32 %v841, %v924
      %v926 = vpop.f32.mrb[0].mxu0
      %v927 = vpop.f32.mrb[0].mxu0
      %v928 = vadd.f32 %v841, %v927
      %v929 = vpop.f32.mrb[0].mxu0
      %930 = vmatprep.mubr.bf16.mxu0 0
      %931 = vmatmul.mubr.bf16.gmra.mrb[0].mxu0 %v814
      %v932 = vpop.f32.mrb[0].mxu0
      %v933 = vadd.f32 %v841, %v932
      %v934 = vpop.f32.mrb[0].mxu0
      %v935 = vpop.f32.mrb[0].mxu0
      %v936 = vadd.f32 %v841, %v935
      %v937 = vpop.f32.mrb[0].mxu0
      %938 = vmatprep.mubr.bf16.mxu0 0
      %939 = vmatmul.mubr.bf16.gmra.mrb[0].mxu0 %v815
      %v940 = vpop.f32.mrb[0].mxu0
      %v941 = vadd.f32 %v841, %v940
      %v942 = vpop.f32.mrb[0].mxu0
      %v943 = vpop.f32.mrb[0].mxu0
      %v944 = vadd.f32 %v841, %v943
      %v945 = vpop.f32.mrb[0].mxu0
      %946 = vmatprep.mubr.bf16.mxu0 0
      %947 = vmatmul.mubr.bf16.gmra.mrb[0].mxu0 %v816
      %v948 = vpop.f32.mrb[0].mxu0
      %v949 = vadd.f32 %v841, %v948
      %v950 = vpop.f32.mrb[0].mxu0
      %v951 = vpop.f32.mrb[0].mxu0
      %v952 = vadd.f32 %v841, %v951
      %v953 = vpop.f32.mrb[0].mxu0
      %954 = vmatprep.mubr.bf16.mxu0 0
      %955 = vmatmul.mubr.bf16.gmra.mrb[0].mxu0 %v817
      %v956 = vpop.f32.mrb[0].mxu0
      %v957 = vadd.f32 %v841, %v956
      %v958 = vpop.f32.mrb[0].mxu0
      %v959 = vpop.f32.mrb[0].mxu0
      %v960 = vadd.f32 %v841, %v959
      %v961 = vpop.f32.mrb[0].mxu0
      %962 = vmatprep.mubr.bf16.mxu0 0
      %963 = vmatmul.mubr.bf16.gmra.mrb[0].mxu0 %v818
      %v964 = vpop.f32.mrb[0].mxu0
      %v965 = vadd.f32 %v841, %v964
      %v966 = vpop.f32.mrb[0].mxu0
      %v967 = vpop.f32.mrb[0].mxu0
      %v968 = vadd.f32 %v841, %v967
      %v969 = vpop.f32.mrb[0].mxu0
      %970 = vmatprep.mubr.bf16.mxu0 0
      %971 = vmatmul.mubr.bf16.gmra.mrb[0].mxu0 %v819
      %v972 = vpop.f32.mrb[0].mxu0
      %v973 = vadd.f32 %v841, %v972
      %v974 = vpop.f32.mrb[0].mxu0
      %v975 = vpop.f32.mrb[0].mxu0
      %v976 = vadd.f32 %v841, %v975
      %v977 = vpop.f32.mrb[0].mxu0
      %978 = vmatprep.mubr.bf16.mxu0 0
      %979 = vmatmul.mubr.bf16.gmra.mrb[0].mxu0 %v820
      %v980 = vpop.f32.mrb[0].mxu0
      %v981 = vadd.f32 %v841, %v980
      %v982 = vpop.f32.mrb[0].mxu0
      %v983 = vpop.f32.mrb[0].mxu0
      %v984 = vadd.f32 %v841, %v983
      %v985 = vpop.f32.mrb[0].mxu0
      %986 = vdwg.mxu0
      %v987 = vadd.f32 %v406, %v925
      %v988 = vadd.f32 %v407, %v928
      %v989 = vadd.f32 %v408, %v933
      %v990 = vadd.f32 %v409, %v936
      %v991 = vadd.f32 %v410, %v941
      %v992 = vadd.f32 %v411, %v944
      %v993 = vadd.f32 %v412, %v949
      %v994 = vadd.f32 %v413, %v952
      %v995 = vadd.f32 %v414, %v957
      %v996 = vadd.f32 %v415, %v960
      %v997 = vadd.f32 %v416, %v965
      %v998 = vadd.f32 %v417, %v968
      %v999 = vadd.f32 %v418, %v973
      %v1000 = vadd.f32 %v419, %v976
      %v1001 = vadd.f32 %v420, %v981
      %v1002 = vadd.f32 %v421, %v984
      %1003 = vst [vmem:[#allocation14] sm:$0xff] %v987
      %1004 = vst [vmem:[#allocation14 + $0x8] sm:$0xff] %v988
      %1005 = vst [vmem:[#allocation14 + $0x10] sm:$0xff] %v989
      %1006 = vst [vmem:[#allocation14 + $0x18] sm:$0xff] %v990
      %1007 = vst [vmem:[#allocation14 + $0x20] sm:$0xff] %v991
      %1008 = vst [vmem:[#allocation14 + $0x28] sm:$0xff] %v992
      %1009 = vst [vmem:[#allocation14 + $0x30] sm:$0xff] %v993
      %1010 = vst [vmem:[#allocation14 + $0x38] sm:$0xff] %v994
      %1011 = vst [vmem:[#allocation14 + $0x40] sm:$0xff] %v995
      %1012 = vst [vmem:[#allocation14 + $0x48] sm:$0xff] %v996
      %1013 = vst [vmem:[#allocation14 + $0x50] sm:$0xff] %v997
      %1014 = vst [vmem:[#allocation14 + $0x58] sm:$0xff] %v998
      %1015 = vst [vmem:[#allocation14 + $0x60] sm:$0xff] %v999
      %1016 = vst [vmem:[#allocation14 + $0x68] sm:$0xff] %v1000
      %1017 = vst [vmem:[#allocation14 + $0x70] sm:$0xff] %v1001
      %1018 = vst [vmem:[#allocation14 + $0x78] sm:$0xff] %v1002
    $region61: #{tpu_custom_call.1} parent=1 // pred_fallthru
      _
    // Predicated region
    $region62: #{tpu_custom_call.1} parent=1 // pred_check
      _
    $region63: #{tpu_custom_call.1} parent=1 // pred_check_branch
      %1020 = sbr.rel (0) target = $region65
    $region64: #{tpu_custom_call.1} parent=1 // pred_region
      %s1022 = ssub.s32 2048, 2048
      %1023 = vsyncadd [#allocation5], %s1022
      %s1024 = sshll.u32 [#allocation14], 4
      %s1025 = int_to_ptr.vmem [resolvable:$true] %s1024
      %1030 = dma.vmem_to_hbm [thread:$0]  %s1025, 2048, %s7, [#allocation5], 128, 128, 8
    $region65: #{tpu_custom_call.1} parent=1 // pred_fallthru
      _
    // Predicated region
    $region66: #{tpu_custom_call.1} parent=1 // pred_check
      _
    $region67: #{tpu_custom_call.1} parent=1 // pred_check_branch
      %1032 = sbr.rel (0) target = $region69
    $region68: #{tpu_custom_call.1} parent=1 // pred_region
      %1033 = dma.done [#allocation5], 2048
    $region69: #{tpu_custom_call.1} parent=1 // pred_fallthru
      _
    %1034 = vsyncpa [#allocation4], 1
    %1035 = vsyncpa [#allocation7], 1
    %1036 = vsyncpa [#allocation10], 1
    %1037 = vsyncpa [#allocation13], 1
    %1038 = vsyncpa [#allocation5], 1

// kernel: tpu_custom_call.1
$region0: #{tpu_custom_call.1}
  #allocation0 [shape = 'u32[]', space=smem, size = 0x4, offset = 0x4, fixed_abs, tag = 'smem constant byte address 0x4 - core index']
  #allocation1 [shape = 'u32[144,128]{1,0:T(1,128)}', space=vmem, size = 0x12000, scoped, tag = 'internal scratch']
  #allocation2 [shape = 'f32[128,128]{1,0:T(8,128)}', space=vmem, size = 0x10000, scoped, tag = 'scratch operand']
  %s0 = inlined_call_operand.hbm [shape: bf16[128,128], index: 0, kind: input, shape index: {}]
  %s1 = inlined_call_operand.hbm [shape: bf16[128,128], index: 1, kind: input, shape index: {}]
  %s2 = inlined_call_operand.hbm [shape: f32[128,128], index: 2, kind: input, shape index: {}]
  %s3 = inlined_call_operand.hbm [shape: bf16[128,128], index: 3, kind: input, shape index: {}]
  %s4 = inlined_call_operand.hbm [shape: bf16[128,128], index: 4, kind: input, shape index: {}]
  %s5 = inlined_call_operand.hbm [shape: bf16[128,128], index: 5, kind: input, shape index: {}]
  %s6 = inlined_call_operand.vmem [shape: f32[2,128], index: 6, kind: input, shape index: {}]
  %s7 = inlined_call_operand.hbm [shape: f32[128,128], index: 7, kind: output, shape index: {}]
  %s8 = sld [smem:[#allocation0]]
  $region70: #{tpu_custom_call.1} parent=0
    _
  %s10 = ssub.s32 1, %s8
  %s11 = scalar_select 0, %s10, %s8
  $region1: #{tpu_custom_call.1} parent=0
    #allocation3 [shape = 'u8[32768]{0}', space=vmem, size = 0x8000, scoped, tag = 'input window, operand 0, single buffered']
    #allocation4 [shape = 's32[1]{0}', space=sflag, size = 0x4, scoped, tag = 'scoped memory for tpu_custom_call.1']
    #allocation5 [shape = 's32[1]{0}', space=sflag, size = 0x4, scoped, tag = 'scoped memory for tpu_custom_call.1']
    #allocation6 [shape = 'u8[32768]{0}', space=vmem, size = 0x8000, scoped, tag = 'input window, operand 1, single buffered']
    #allocation7 [shape = 's32[1]{0}', space=sflag, size = 0x4, scoped, tag = 'scoped memory for tpu_custom_call.1']
    #allocation8 [shape = 'u8[65536]{0}', space=vmem, size = 0x10000, scoped, tag = 'input window, operand 2, single buffered']
    #allocation9 [shape = 'u8[32768]{0}', space=vmem, size = 0x8000, scoped, tag = 'input window, operand 3, single buffered']
    #allocation10 [shape = 's32[1]{0}', space=sflag, size = 0x4, scoped, tag = 'scoped memory for tpu_custom_call.1']
    #allocation11 [shape = 'u8[32768]{0}', space=vmem, size = 0x8000, scoped, tag = 'input window, operand 4, single buffered']
    #allocation12 [shape = 'u8[32768]{0}', space=vmem, size = 0x8000, scoped, tag = 'input window, operand 5, single buffered']
    #allocation13 [shape = 's32[1]{0}', space=sflag, size = 0x4, scoped, tag = 'scoped memory for tpu_custom_call.1']
    #allocation14 [shape = 'u8[65536]{0}', space=vmem, size = 0x10000, scoped, tag = 'output window, operand 0, single buffered']
    %12 = vsyncpa [#allocation4], 0
    %13 = vsyncpa [#allocation7], 0
    %14 = vsyncpa [#allocation10], 0
    %15 = vsyncpa [#allocation13], 0
    %16 = vsyncpa [#allocation5], 0
    // Predicated region
    $region2: #{tpu_custom_call.1} parent=1 // pred_check
      _
    $region3: #{tpu_custom_call.1} parent=1 // pred_check_branch
      %18 = sbr.rel (0) target = $region5
    $region4: #{tpu_custom_call.1} parent=1 // pred_region
      %s20 = ssub.s32 1024, 1024
      %21 = vsyncadd [#allocation4], %s20
      %s22 = sshll.u32 [#allocation3], 4
      %s23 = int_to_ptr.vmem [resolvable:$true] %s22
      %28 = dma.hbm_to_vmem [thread:$0]  %s0, 1024, %s23, [#allocation4], 64, 64, 4
    $region5: #{tpu_custom_call.1} parent=1 // pred_fallthru
      _
    // Predicated region
    $region6: #{tpu_custom_call.1} parent=1 // pred_check
      _
    $region7: #{tpu_custom_call.1} parent=1 // pred_check_branch
      %30 = sbr.rel (0) target = $region9
    $region8: #{tpu_custom_call.1} parent=1 // pred_region
      %s32 = ssub.s32 1024, 1024
      %33 = vsyncadd [#allocation7], %s32
      %s34 = sshll.u32 [#allocation6], 4
      %s35 = int_to_ptr.vmem [resolvable:$true] %s34
      %40 = dma.hbm_to_vmem [thread:$0]  %s1, 1024, %s35, [#allocation7], 64, 64, 4
    $region9: #{tpu_custom_call.1} parent=1 // pred_fallthru
      _
    // Predicated region
    $region10: #{tpu_custom_call.1} parent=1 // pred_check
      _
    $region11: #{tpu_custom_call.1} parent=1 // pred_check_branch
      %42 = sbr.rel (0) target = $region13
    $region12: #{tpu_custom_call.1} parent=1 // pred_region
      %s44 = ssub.s32 2048, 2048
      %45 = vsyncadd [#allocation7], %s44
      %s46 = sshll.u32 [#allocation8], 4
      %s47 = int_to_ptr.vmem [resolvable:$true] %s46
      %52 = dma.hbm_to_vmem [thread:$0]  %s2, 2048, %s47, [#allocation7], 128, 128, 8
    $region13: #{tpu_custom_call.1} parent=1 // pred_fallthru
      _
    // Predicated region
    $region14: #{tpu_custom_call.1} parent=1 // pred_check
      _
    $region15: #{tpu_custom_call.1} parent=1 // pred_check_branch
      %54 = sbr.rel (0) target = $region17
    $region16: #{tpu_custom_call.1} parent=1 // pred_region
      %s56 = ssub.s32 1024, 1024
      %57 = vsyncadd [#allocation10], %s56
      %s58 = sshll.u32 [#allocation9], 4
      %s59 = int_to_ptr.vmem [resolvable:$true] %s58
      %64 = dma.hbm_to_vmem [thread:$0]  %s3, 1024, %s59, [#allocation10], 64, 64, 4
    $region17: #{tpu_custom_call.1} parent=1 // pred_fallthru
      _
    // Predicated region
    $region18: #{tpu_custom_call.1} parent=1 // pred_check
      _
    $region19: #{tpu_custom_call.1} parent=1 // pred_check_branch
      %66 = sbr.rel (0) target = $region21
    $region20: #{tpu_custom_call.1} parent=1 // pred_region
      %s68 = ssub.s32 1024, 1024
      %69 = vsyncadd [#allocation10], %s68
      %s70 = sshll.u32 [#allocation11], 4
      %s71 = int_to_ptr.vmem [resolvable:$true] %s70
      %76 = dma.hbm_to_vmem [thread:$0]  %s4, 1024, %s71, [#allocation10], 64, 64, 4
    $region21: #{tpu_custom_call.1} parent=1 // pred_fallthru
      _
    // Predicated region
    $region22: #{tpu_custom_call.1} parent=1 // pred_check
      _
    $region23: #{tpu_custom_call.1} parent=1 // pred_check_branch
      %78 = sbr.rel (0) target = $region25
    $region24: #{tpu_custom_call.1} parent=1 // pred_region
      %s80 = ssub.s32 1024, 1024
      %81 = vsyncadd [#allocation13], %s80
      %s82 = sshll.u32 [#allocation12], 4
      %s83 = int_to_ptr.vmem [resolvable:$true] %s82
      %88 = dma.hbm_to_vmem [thread:$0]  %s5, 1024, %s83, [#allocation13], 64, 64, 4
    $region25: #{tpu_custom_call.1} parent=1 // pred_fallthru
      _
    // Predicated region
    $region26: #{tpu_custom_call.1} parent=1 // pred_check
      _
    $region27: #{tpu_custom_call.1} parent=1 // pred_check_branch
      %90 = sbr.rel (0) target = $region29
    $region28: #{tpu_custom_call.1} parent=1 // pred_region
      _
    $region29: #{tpu_custom_call.1} parent=1 // pred_fallthru
      _
    // Predicated region
    $region30: #{tpu_custom_call.1} parent=1 // pred_check
      _
    $region31: #{tpu_custom_call.1} parent=1 // pred_check_branch
      %92 = sbr.rel (0) target = $region33
    $region32: #{tpu_custom_call.1} parent=1 // pred_region
      %93 = dma.done [#allocation4], 1024
    $region33: #{tpu_custom_call.1} parent=1 // pred_fallthru
      _
    // Predicated region
    $region34: #{tpu_custom_call.1} parent=1 // pred_check
      _
    $region35: #{tpu_custom_call.1} parent=1 // pred_check_branch
      %95 = sbr.rel (0) target = $region37
    $region36: #{tpu_custom_call.1} parent=1 // pred_region
      %96 = dma.done [#allocation7], 1024
    $region37: #{tpu_custom_call.1} parent=1 // pred_fallthru
      _
    // Predicated region
    $region38: #{tpu_custom_call.1} parent=1 // pred_check
      _
    $region39: #{tpu_custom_call.1} parent=1 // pred_check_branch
      %98 = sbr.rel (0) target = $region41
    $region40: #{tpu_custom_call.1} parent=1 // pred_region
      %99 = dma.done [#allocation7], 2048
    $region41: #{tpu_custom_call.1} parent=1 // pred_fallthru
      _
    // Predicated region
    $region42: #{tpu_custom_call.1} parent=1 // pred_check
      _
    $region43: #{tpu_custom_call.1} parent=1 // pred_check_branch
      %101 = sbr.rel (0) target = $region45
    $region44: #{tpu_custom_call.1} parent=1 // pred_region
      %102 = dma.done [#allocation10], 1024
    $region45: #{tpu_custom_call.1} parent=1 // pred_fallthru
      _
    // Predicated region
    $region46: #{tpu_custom_call.1} parent=1 // pred_check
      _
    $region47: #{tpu_custom_call.1} parent=1 // pred_check_branch
      %104 = sbr.rel (0) target = $region49
    $region48: #{tpu_custom_call.1} parent=1 // pred_region
      %105 = dma.done [#allocation10], 1024
    $region49: #{tpu_custom_call.1} parent=1 // pred_fallthru
      _
    // Predicated region
    $region50: #{tpu_custom_call.1} parent=1 // pred_check
      _
    $region51: #{tpu_custom_call.1} parent=1 // pred_check_branch
      %107 = sbr.rel (0) target = $region53
    $region52: #{tpu_custom_call.1} parent=1 // pred_region
      %108 = dma.done [#allocation13], 1024
    $region53: #{tpu_custom_call.1} parent=1 // pred_fallthru
      _
    %p110 = scmp.eq.s32.totalorder 0, 0
    // Predicated region
    $region54: #{tpu_custom_call.1} parent=1 // pred_check
      %p111 = pneg %p110
    $region55: #{tpu_custom_call.1} parent=1 // pred_check_branch
      %113 = sbr.rel (%p111) target = $region57
    $region56: #{tpu_custom_call.1} parent=1 // pred_region
      %114 = vst [vmem:[#allocation2] sm:$0xff] 0.0
      %115 = vst [vmem:[#allocation2 + $0x8] sm:$0xff] 0.0
      %116 = vst [vmem:[#allocation2 + $0x10] sm:$0xff] 0.0
      %117 = vst [vmem:[#allocation2 + $0x18] sm:$0xff] 0.0
      %118 = vst [vmem:[#allocation2 + $0x20] sm:$0xff] 0.0
      %119 = vst [vmem:[#allocation2 + $0x28] sm:$0xff] 0.0
      %120 = vst [vmem:[#allocation2 + $0x30] sm:$0xff] 0.0
      %121 = vst [vmem:[#allocation2 + $0x38] sm:$0xff] 0.0
      %122 = vst [vmem:[#allocation2 + $0x40] sm:$0xff] 0.0
      %123 = vst [vmem:[#allocation2 + $0x48] sm:$0xff] 0.0
      %124 = vst [vmem:[#allocation2 + $0x50] sm:$0xff] 0.0
      %125 = vst [vmem:[#allocation2 + $0x58] sm:$0xff] 0.0
      %126 = vst [vmem:[#allocation2 + $0x60] sm:$0xff] 0.0
      %127 = vst [vmem:[#allocation2 + $0x68] sm:$0xff] 0.0
      %128 = vst [vmem:[#allocation2 + $0x70] sm:$0xff] 0.0
      %129 = vst [vmem:[#allocation2 + $0x78] sm:$0xff] 0.0
    $region57: #{tpu_custom_call.1} parent=1 // pred_fallthru
      _
    %v130 = vld [vmem:[#allocation2] sm:$0xff]
    %v131 = vld [vmem:[#allocation2 + $0x8] sm:$0xff]
    %v132 = vld [vmem:[#allocation2 + $0x10] sm:$0xff]
    %v133 = vld [vmem:[#allocation2 + $0x18] sm:$0xff]
    %v134 = vld [vmem:[#allocation2 + $0x20] sm:$0xff]
    %v135 = vld [vmem:[#allocation2 + $0x28] sm:$0xff]
    %v136 = vld [vmem:[#allocation2 + $0x30] sm:$0xff]
    %v137 = vld [vmem:[#allocation2 + $0x38] sm:$0xff]
    %v138 = vld [vmem:[#allocation2 + $0x40] sm:$0xff]
    %v139 = vld [vmem:[#allocation2 + $0x48] sm:$0xff]
    %v140 = vld [vmem:[#allocation2 + $0x50] sm:$0xff]
    %v141 = vld [vmem:[#allocation2 + $0x58] sm:$0xff]
    %v142 = vld [vmem:[#allocation2 + $0x60] sm:$0xff]
    %v143 = vld [vmem:[#allocation2 + $0x68] sm:$0xff]
    %v144 = vld [vmem:[#allocation2 + $0x70] sm:$0xff]
    %v145 = vld [vmem:[#allocation2 + $0x78] sm:$0xff]
    %v146 = vld [vmem:[#allocation3] sm:$0xf]
    %v147 = vld [vmem:[#allocation3 + $0x4] sm:$0xf]
    %v148 = vld [vmem:[#allocation3 + $0x8] sm:$0xf]
    %v149 = vld [vmem:[#allocation3 + $0xc] sm:$0xf]
    %v150 = vld [vmem:[#allocation3 + $0x10] sm:$0xf]
    %v151 = vld [vmem:[#allocation3 + $0x14] sm:$0xf]
    %v152 = vld [vmem:[#allocation3 + $0x18] sm:$0xf]
    %v153 = vld [vmem:[#allocation3 + $0x1c] sm:$0xf]
    %v154 = vld [vmem:[#allocation3 + $0x20] sm:$0xf]
    %v155 = vld [vmem:[#allocation3 + $0x24] sm:$0xf]
    %v156 = vld [vmem:[#allocation3 + $0x28] sm:$0xf]
    %v157 = vld [vmem:[#allocation3 + $0x2c] sm:$0xf]
    %v158 = vld [vmem:[#allocation3 + $0x30] sm:$0xf]
    %v159 = vld [vmem:[#allocation3 + $0x34] sm:$0xf]
    %v160 = vld [vmem:[#allocation3 + $0x38] sm:$0xf]
    %v161 = vld [vmem:[#allocation3 + $0x3c] sm:$0xf]
    %v162 = vld [vmem:[#allocation6] sm:$0xf]
    %v163 = vld [vmem:[#allocation6 + $0x4] sm:$0xf]
    %v164 = vld [vmem:[#allocation6 + $0x8] sm:$0xf]
    %v165 = vld [vmem:[#allocation6 + $0xc] sm:$0xf]
    %v166 = vld [vmem:[#allocation6 + $0x10] sm:$0xf]
    %v167 = vld [vmem:[#allocation6 + $0x14] sm:$0xf]
    %v168 = vld [vmem:[#allocation6 + $0x18] sm:$0xf]
    %v169 = vld [vmem:[#allocation6 + $0x1c] sm:$0xf]
    %v170 = vld [vmem:[#allocation6 + $0x20] sm:$0xf]
    %v171 = vld [vmem:[#allocation6 + $0x24] sm:$0xf]
    %v172 = vld [vmem:[#allocation6 + $0x28] sm:$0xf]
    %v173 = vld [vmem:[#allocation6 + $0x2c] sm:$0xf]
    %v174 = vld [vmem:[#allocation6 + $0x30] sm:$0xf]
    %v175 = vld [vmem:[#allocation6 + $0x34] sm:$0xf]
    %v176 = vld [vmem:[#allocation6 + $0x38] sm:$0xf]
    %v177 = vld [vmem:[#allocation6 + $0x3c] sm:$0xf]
    %v194 = vunpack.c.l.b16 %v146
    %v195 = vunpack.c.l.b16 %v147
    %v196 = vunpack.c.l.b16 %v148
    %v197 = vunpack.c.l.b16 %v149
    %v198 = vunpack.c.l.b16 %v150
    %v199 = vunpack.c.l.b16 %v151
    %v200 = vunpack.c.l.b16 %v152
    %v201 = vunpack.c.l.b16 %v153
    %v202 = vunpack.c.l.b16 %v154
    %v203 = vunpack.c.l.b16 %v155
    %v204 = vunpack.c.l.b16 %v156
    %v205 = vunpack.c.l.b16 %v157
    %v206 = vunpack.c.l.b16 %v158
    %v207 = vunpack.c.l.b16 %v159
    %v208 = vunpack.c.l.b16 %v160
    %v209 = vunpack.c.l.b16 %v161
    %v210 = vpack.c.b16 %v195, %v194
    %v211 = vpack.c.b16 %v197, %v196
    %v212 = vpack.c.b16 %v199, %v198
    %v213 = vpack.c.b16 %v201, %v200
    %v214 = vpack.c.b16 %v203, %v202
    %v215 = vpack.c.b16 %v205, %v204
    %v216 = vpack.c.b16 %v207, %v206
    %v217 = vpack.c.b16 %v209, %v208
    %v242 = vunpack.c.l.b16 %v162
    %v243 = vunpack.c.l.b16 %v163
    %v244 = vunpack.c.l.b16 %v164
    %v245 = vunpack.c.l.b16 %v165
    %v246 = vunpack.c.l.b16 %v166
    %v247 = vunpack.c.l.b16 %v167
    %v248 = vunpack.c.l.b16 %v168
    %v249 = vunpack.c.l.b16 %v169
    %v250 = vunpack.c.l.b16 %v170
    %v251 = vunpack.c.l.b16 %v171
    %v252 = vunpack.c.l.b16 %v172
    %v253 = vunpack.c.l.b16 %v173
    %v254 = vunpack.c.l.b16 %v174
    %v255 = vunpack.c.l.b16 %v175
    %v256 = vunpack.c.l.b16 %v176
    %v257 = vunpack.c.l.b16 %v177
    %v258 = vpack.c.b16 %v243, %v242
    %v259 = vpack.c.b16 %v245, %v244
    %v260 = vpack.c.b16 %v247, %v246
    %v261 = vpack.c.b16 %v249, %v248
    %v262 = vpack.c.b16 %v251, %v250
    %v263 = vpack.c.b16 %v253, %v252
    %v264 = vpack.c.b16 %v255, %v254
    %v265 = vpack.c.b16 %v257, %v256
    %274 = vmatprep.subr.bf16.mxu0 0
    %275 = vmatpush1.bf16.msra.mxu0 %v258
    %276 = vmatprep.subr.bf16.mxu0 0
    %277 = vmatpush1.bf16.msra.mxu0 %v259
    %278 = vmatprep.subr.bf16.mxu0 0
    %279 = vmatpush1.bf16.msra.mxu0 %v260
    %280 = vmatprep.subr.bf16.mxu0 0
    %281 = vmatpush1.bf16.msra.mxu0 %v261
    %282 = vmatprep.subr.bf16.mxu0 0
    %283 = vmatpush1.bf16.msra.mxu0 %v262
    %284 = vmatprep.subr.bf16.mxu0 0
    %285 = vmatpush1.bf16.msra.mxu0 %v263
    %286 = vmatprep.subr.bf16.mxu0 0
    %287 = vmatpush1.bf16.msra.mxu0 %v264
    %288 = vmatprep.subr.bf16.mxu0 0
    %289 = vmatpush1.bf16.msra.mxu0 %v265
    %290 = vmatprep.subr.bf16.mxu0 0
    %291 = vmatpush1.bf16.msra.mxu0 0
    %292 = vmatprep.subr.bf16.mxu0 0
    %293 = vmatpush1.bf16.msra.mxu0 0
    %294 = vmatprep.subr.bf16.mxu0 0
    %295 = vmatpush1.bf16.msra.mxu0 0
    %296 = vmatprep.subr.bf16.mxu0 0
    %297 = vmatpush1.bf16.msra.mxu0 0
    %298 = vmatprep.subr.bf16.mxu0 0
    %299 = vmatpush1.bf16.msra.mxu0 0
    %300 = vmatprep.subr.bf16.mxu0 0
    %301 = vmatpush1.bf16.msra.mxu0 0
    %302 = vmatprep.subr.bf16.mxu0 0
    %303 = vmatpush1.bf16.msra.mxu0 0
    %304 = vmatprep.subr.bf16.mxu0 0
    %305 = vmatpush1.bf16.msra.mxu0 0
    %306 = vmatprep.mubr.bf16.mxu0 0
    %307 = vmatmul.mubr.bf16.gmra.mrb[0].mxu0 %v210
    %v308 = vpop.f32.mrb[0].mxu0
    %v309 = vadd.f32 0.0, %v308
    %v310 = vpop.f32.mrb[0].mxu0
    %v311 = vpop.f32.mrb[0].mxu0
    %v312 = vadd.f32 0.0, %v311
    %v313 = vpop.f32.mrb[0].mxu0
    %314 = vmatprep.mubr.bf16.mxu0 0
    %315 = vmatmul.mubr.bf16.gmra.mrb[0].mxu0 %v211
    %v316 = vpop.f32.mrb[0].mxu0
    %v317 = vadd.f32 0.0, %v316
    %v318 = vpop.f32.mrb[0].mxu0
    %v319 = vpop.f32.mrb[0].mxu0
    %v320 = vadd.f32 0.0, %v319
    %v321 = vpop.f32.mrb[0].mxu0
    %322 = vmatprep.mubr.bf16.mxu0 0
    %323 = vmatmul.mubr.bf16.gmra.mrb[0].mxu0 %v212
    %v324 = vpop.f32.mrb[0].mxu0
    %v325 = vadd.f32 0.0, %v324
    %v326 = vpop.f32.mrb[0].mxu0
    %v327 = vpop.f32.mrb[0].mxu0
    %v328 = vadd.f32 0.0, %v327
    %v329 = vpop.f32.mrb[0].mxu0
    %330 = vmatprep.mubr.bf16.mxu0 0
    %331 = vmatmul.mubr.bf16.gmra.mrb[0].mxu0 %v213
    %v332 = vpop.f32.mrb[0].mxu0
    %v333 = vadd.f32 0.0, %v332
    %v334 = vpop.f32.mrb[0].mxu0
    %v335 = vpop.f32.mrb[0].mxu0
    %v336 = vadd.f32 0.0, %v335
    %v337 = vpop.f32.mrb[0].mxu0
    %338 = vmatprep.mubr.bf16.mxu0 0
    %339 = vmatmul.mubr.bf16.gmra.mrb[0].mxu0 %v214
    %v340 = vpop.f32.mrb[0].mxu0
    %v341 = vadd.f32 0.0, %v340
    %v342 = vpop.f32.mrb[0].mxu0
    %v343 = vpop.f32.mrb[0].mxu0
    %v344 = vadd.f32 0.0, %v343
    %v345 = vpop.f32.mrb[0].mxu0
    %346 = vmatprep.mubr.bf16.mxu0 0
    %347 = vmatmul.mubr.bf16.gmra.mrb[0].mxu0 %v215
    %v348 = vpop.f32.mrb[0].mxu0
    %v349 = vadd.f32 0.0, %v348
    %v350 = vpop.f32.mrb[0].mxu0
    %v351 = vpop.f32.mrb[0].mxu0
    %v352 = vadd.f32 0.0, %v351
    %v353 = vpop.f32.mrb[0].mxu0
    %354 = vmatprep.mubr.bf16.mxu0 0
    %355 = vmatmul.mubr.bf16.gmra.mrb[0].mxu0 %v216
    %v356 = vpop.f32.mrb[0].mxu0
    %v357 = vadd.f32 0.0, %v356
    %v358 = vpop.f32.mrb[0].mxu0
    %v359 = vpop.f32.mrb[0].mxu0
    %v360 = vadd.f32 0.0, %v359
    %v361 = vpop.f32.mrb[0].mxu0
    %362 = vmatprep.mubr.bf16.mxu0 0
    %363 = vmatmul.mubr.bf16.gmra.mrb[0].mxu0 %v217
    %v364 = vpop.f32.mrb[0].mxu0
    %v365 = vadd.f32 0.0, %v364
    %v366 = vpop.f32.mrb[0].mxu0
    %v367 = vpop.f32.mrb[0].mxu0
    %v368 = vadd.f32 0.0, %v367
    %v369 = vpop.f32.mrb[0].mxu0
    %370 = vdwg.mxu0
    %v371 = vadd.f32 %v130, %v309
    %v372 = vadd.f32 %v131, %v312
    %v373 = vadd.f32 %v132, %v317
    %v374 = vadd.f32 %v133, %v320
    %v375 = vadd.f32 %v134, %v325
    %v376 = vadd.f32 %v135, %v328
    %v377 = vadd.f32 %v136, %v333
    %v378 = vadd.f32 %v137, %v336
    %v379 = vadd.f32 %v138, %v341
    %v380 = vadd.f32 %v139, %v344
    %v381 = vadd.f32 %v140, %v349
    %v382 = vadd.f32 %v141, %v352
    %v383 = vadd.f32 %v142, %v357
    %v384 = vadd.f32 %v143, %v360
    %v385 = vadd.f32 %v144, %v365
    %v386 = vadd.f32 %v145, %v368
    %387 = vst [vmem:[#allocation2] sm:$0xff] %v371
    %388 = vst [vmem:[#allocation2 + $0x8] sm:$0xff] %v372
    %389 = vst [vmem:[#allocation2 + $0x10] sm:$0xff] %v373
    %390 = vst [vmem:[#allocation2 + $0x18] sm:$0xff] %v374
    %391 = vst [vmem:[#allocation2 + $0x20] sm:$0xff] %v375
    %392 = vst [vmem:[#allocation2 + $0x28] sm:$0xff] %v376
    %393 = vst [vmem:[#allocation2 + $0x30] sm:$0xff] %v377
    %394 = vst [vmem:[#allocation2 + $0x38] sm:$0xff] %v378
    %395 = vst [vmem:[#allocation2 + $0x40] sm:$0xff] %v379
    %396 = vst [vmem:[#allocation2 + $0x48] sm:$0xff] %v380
    %397 = vst [vmem:[#allocation2 + $0x50] sm:$0xff] %v381
    %398 = vst [vmem:[#allocation2 + $0x58] sm:$0xff] %v382
    %399 = vst [vmem:[#allocation2 + $0x60] sm:$0xff] %v383
    %400 = vst [vmem:[#allocation2 + $0x68] sm:$0xff] %v384
    %401 = vst [vmem:[#allocation2 + $0x70] sm:$0xff] %v385
    %402 = vst [vmem:[#allocation2 + $0x78] sm:$0xff] %v386
    // Predicated region
    $region58: #{tpu_custom_call.1} parent=1 // pred_check
      %p403 = pneg %p110
    $region59: #{tpu_custom_call.1} parent=1 // pred_check_branch
      %405 = sbr.rel (%p403) target = $region61
    $region60: #{tpu_custom_call.1} parent=1 // pred_region
      %v406 = vld [vmem:[#allocation8] sm:$0xff]
      %v407 = vld [vmem:[#allocation8 + $0x8] sm:$0xff]
      %v408 = vld [vmem:[#allocation8 + $0x10] sm:$0xff]
      %v409 = vld [vmem:[#allocation8 + $0x18] sm:$0xff]
      %v410 = vld [vmem:[#allocation8 + $0x20] sm:$0xff]
      %v411 = vld [vmem:[#allocation8 + $0x28] sm:$0xff]
      %v412 = vld [vmem:[#allocation8 + $0x30] sm:$0xff]
      %v413 = vld [vmem:[#allocation8 + $0x38] sm:$0xff]
      %v414 = vld [vmem:[#allocation8 + $0x40] sm:$0xff]
      %v415 = vld [vmem:[#allocation8 + $0x48] sm:$0xff]
      %v416 = vld [vmem:[#allocation8 + $0x50] sm:$0xff]
      %v417 = vld [vmem:[#allocation8 + $0x58] sm:$0xff]
      %v418 = vld [vmem:[#allocation8 + $0x60] sm:$0xff]
      %v419 = vld [vmem:[#allocation8 + $0x68] sm:$0xff]
      %v420 = vld [vmem:[#allocation8 + $0x70] sm:$0xff]
      %v421 = vld [vmem:[#allocation8 + $0x78] sm:$0xff]
      %v422 = vld [vmem:[#allocation9] sm:$0xf]
      %v423 = vld [vmem:[#allocation9 + $0x4] sm:$0xf]
      %v424 = vld [vmem:[#allocation9 + $0x8] sm:$0xf]
      %v425 = vld [vmem:[#allocation9 + $0xc] sm:$0xf]
      %v426 = vld [vmem:[#allocation9 + $0x10] sm:$0xf]
      %v427 = vld [vmem:[#allocation9 + $0x14] sm:$0xf]
      %v428 = vld [vmem:[#allocation9 + $0x18] sm:$0xf]
      %v429 = vld [vmem:[#allocation9 + $0x1c] sm:$0xf]
      %v430 = vld [vmem:[#allocation9 + $0x20] sm:$0xf]
      %v431 = vld [vmem:[#allocation9 + $0x24] sm:$0xf]
      %v432 = vld [vmem:[#allocation9 + $0x28] sm:$0xf]
      %v433 = vld [vmem:[#allocation9 + $0x2c] sm:$0xf]
      %v434 = vld [vmem:[#allocation9 + $0x30] sm:$0xf]
      %v435 = vld [vmem:[#allocation9 + $0x34] sm:$0xf]
      %v436 = vld [vmem:[#allocation9 + $0x38] sm:$0xf]
      %v437 = vld [vmem:[#allocation9 + $0x3c] sm:$0xf]
      %v438 = vld [vmem:[#allocation2] sm:$0xff]
      %v439 = vld [vmem:[#allocation2 + $0x8] sm:$0xff]
      %v440 = vld [vmem:[#allocation2 + $0x10] sm:$0xff]
      %v441 = vld [vmem:[#allocation2 + $0x18] sm:$0xff]
      %v442 = vld [vmem:[#allocation2 + $0x20] sm:$0xff]
      %v443 = vld [vmem:[#allocation2 + $0x28] sm:$0xff]
      %v444 = vld [vmem:[#allocation2 + $0x30] sm:$0xff]
      %v445 = vld [vmem:[#allocation2 + $0x38] sm:$0xff]
      %v446 = vld [vmem:[#allocation2 + $0x40] sm:$0xff]
      %v447 = vld [vmem:[#allocation2 + $0x48] sm:$0xff]
      %v448 = vld [vmem:[#allocation2 + $0x50] sm:$0xff]
      %v449 = vld [vmem:[#allocation2 + $0x58] sm:$0xff]
      %v450 = vld [vmem:[#allocation2 + $0x60] sm:$0xff]
      %v451 = vld [vmem:[#allocation2 + $0x68] sm:$0xff]
      %v452 = vld [vmem:[#allocation2 + $0x70] sm:$0xff]
      %v453 = vld [vmem:[#allocation2 + $0x78] sm:$0xff]
      %v454 = vpack.c.bf16 %v407, %v406
      %v455 = vpack.c.bf16 %v409, %v408
      %v456 = vpack.c.bf16 %v411, %v410
      %v457 = vpack.c.bf16 %v413, %v412
      %v458 = vpack.c.bf16 %v415, %v414
      %v459 = vpack.c.bf16 %v417, %v416
      %v460 = vpack.c.bf16 %v419, %v418
      %v461 = vpack.c.bf16 %v421, %v420
      %v462 = vpack.c.bf16 %v439, %v438
      %v463 = vpack.c.bf16 %v441, %v440
      %v464 = vpack.c.bf16 %v443, %v442
      %v465 = vpack.c.bf16 %v445, %v444
      %v466 = vpack.c.bf16 %v447, %v446
      %v467 = vpack.c.bf16 %v449, %v448
      %v468 = vpack.c.bf16 %v451, %v450
      %v469 = vpack.c.bf16 %v453, %v452
      %v470 = vld [vmem:[#allocation11] sm:$0xf]
      %v471 = vld [vmem:[#allocation11 + $0x4] sm:$0xf]
      %v472 = vld [vmem:[#allocation11 + $0x8] sm:$0xf]
      %v473 = vld [vmem:[#allocation11 + $0xc] sm:$0xf]
      %v474 = vld [vmem:[#allocation11 + $0x10] sm:$0xf]
      %v475 = vld [vmem:[#allocation11 + $0x14] sm:$0xf]
      %v476 = vld [vmem:[#allocation11 + $0x18] sm:$0xf]
      %v477 = vld [vmem:[#allocation11 + $0x1c] sm:$0xf]
      %v478 = vld [vmem:[#allocation11 + $0x20] sm:$0xf]
      %v479 = vld [vmem:[#allocation11 + $0x24] sm:$0xf]
      %v480 = vld [vmem:[#allocation11 + $0x28] sm:$0xf]
      %v481 = vld [vmem:[#allocation11 + $0x2c] sm:$0xf]
      %v482 = vld [vmem:[#allocation11 + $0x30] sm:$0xf]
      %v483 = vld [vmem:[#allocation11 + $0x34] sm:$0xf]
      %v484 = vld [vmem:[#allocation11 + $0x38] sm:$0xf]
      %v485 = vld [vmem:[#allocation11 + $0x3c] sm:$0xf]
      %v502 = vunpack.c.l.b16 %v470
      %v503 = vunpack.c.l.b16 %v471
      %v504 = vunpack.c.l.b16 %v472
      %v505 = vunpack.c.l.b16 %v473
      %v506 = vunpack.c.l.b16 %v474
      %v507 = vunpack.c.l.b16 %v475
      %v508 = vunpack.c.l.b16 %v476
      %v509 = vunpack.c.l.b16 %v477
      %v510 = vunpack.c.l.b16 %v478
      %v511 = vunpack.c.l.b16 %v479
      %v512 = vunpack.c.l.b16 %v480
      %v513 = vunpack.c.l.b16 %v481
      %v514 = vunpack.c.l.b16 %v482
      %v515 = vunpack.c.l.b16 %v483
      %v516 = vunpack.c.l.b16 %v484
      %v517 = vunpack.c.l.b16 %v485
      %v518 = vpack.c.b16 %v503, %v502
      %v519 = vpack.c.b16 %v505, %v504
      %v520 = vpack.c.b16 %v507, %v506
      %v521 = vpack.c.b16 %v509, %v508
      %v522 = vpack.c.b16 %v511, %v510
      %v523 = vpack.c.b16 %v513, %v512
      %v524 = vpack.c.b16 %v515, %v514
      %v525 = vpack.c.b16 %v517, %v516
      %534 = vmatprep.subr.bf16.mxu0 0
      %535 = vmatpush1.bf16.msra.mxu0 %v518
      %536 = vmatprep.subr.bf16.mxu0 0
      %537 = vmatpush1.bf16.msra.mxu0 %v519
      %538 = vmatprep.subr.bf16.mxu0 0
      %539 = vmatpush1.bf16.msra.mxu0 %v520
      %540 = vmatprep.subr.bf16.mxu0 0
      %541 = vmatpush1.bf16.msra.mxu0 %v521
      %542 = vmatprep.subr.bf16.mxu0 0
      %543 = vmatpush1.bf16.msra.mxu0 %v522
      %544 = vmatprep.subr.bf16.mxu0 0
      %545 = vmatpush1.bf16.msra.mxu0 %v523
      %546 = vmatprep.subr.bf16.mxu0 0
      %547 = vmatpush1.bf16.msra.mxu0 %v524
      %548 = vmatprep.subr.bf16.mxu0 0
      %549 = vmatpush1.bf16.msra.mxu0 %v525
      %550 = vmatprep.subr.bf16.mxu0 0
      %551 = vmatpush1.bf16.msra.mxu0 0
      %552 = vmatprep.subr.bf16.mxu0 0
      %553 = vmatpush1.bf16.msra.mxu0 0
      %554 = vmatprep.subr.bf16.mxu0 0
      %555 = vmatpush1.bf16.msra.mxu0 0
      %556 = vmatprep.subr.bf16.mxu0 0
      %557 = vmatpush1.bf16.msra.mxu0 0
      %558 = vmatprep.subr.bf16.mxu0 0
      %559 = vmatpush1.bf16.msra.mxu0 0
      %560 = vmatprep.subr.bf16.mxu0 0
      %561 = vmatpush1.bf16.msra.mxu0 0
      %562 = vmatprep.subr.bf16.mxu0 0
      %563 = vmatpush1.bf16.msra.mxu0 0
      %564 = vmatprep.subr.bf16.mxu0 0
      %565 = vmatpush1.bf16.msra.mxu0 0
      %566 = vmatprep.mubr.bf16.mxu0 0
      %567 = vmatmul.mubr.bf16.gmra.mrb[0].mxu0 %v462
      %v568 = vpop.f32.mrb[0].mxu0
      %v569 = vadd.f32 0.0, %v568
      %v570 = vpop.f32.mrb[0].mxu0
      %v571 = vpop.f32.mrb[0].mxu0
      %v572 = vadd.f32 0.0, %v571
      %v573 = vpop.f32.mrb[0].mxu0
      %574 = vmatprep.mubr.bf16.mxu0 0
      %575 = vmatmul.mubr.bf16.gmra.mrb[0].mxu0 %v463
      %v576 = vpop.f32.mrb[0].mxu0
      %v577 = vadd.f32 0.0, %v576
      %v578 = vpop.f32.mrb[0].mxu0
      %v579 = vpop.f32.mrb[0].mxu0
      %v580 = vadd.f32 0.0, %v579
      %v581 = vpop.f32.mrb[0].mxu0
      %582 = vmatprep.mubr.bf16.mxu0 0
      %583 = vmatmul.mubr.bf16.gmra.mrb[0].mxu0 %v464
      %v584 = vpop.f32.mrb[0].mxu0
      %v585 = vadd.f32 0.0, %v584
      %v586 = vpop.f32.mrb[0].mxu0
      %v587 = vpop.f32.mrb[0].mxu0
      %v588 = vadd.f32 0.0, %v587
      %v589 = vpop.f32.mrb[0].mxu0
      %590 = vmatprep.mubr.bf16.mxu0 0
      %591 = vmatmul.mubr.bf16.gmra.mrb[0].mxu0 %v465
      %v592 = vpop.f32.mrb[0].mxu0
      %v593 = vadd.f32 0.0, %v592
      %v594 = vpop.f32.mrb[0].mxu0
      %v595 = vpop.f32.mrb[0].mxu0
      %v596 = vadd.f32 0.0, %v595
      %v597 = vpop.f32.mrb[0].mxu0
      %598 = vmatprep.mubr.bf16.mxu0 0
      %599 = vmatmul.mubr.bf16.gmra.mrb[0].mxu0 %v466
      %v600 = vpop.f32.mrb[0].mxu0
      %v601 = vadd.f32 0.0, %v600
      %v602 = vpop.f32.mrb[0].mxu0
      %v603 = vpop.f32.mrb[0].mxu0
      %v604 = vadd.f32 0.0, %v603
      %v605 = vpop.f32.mrb[0].mxu0
      %606 = vmatprep.mubr.bf16.mxu0 0
      %607 = vmatmul.mubr.bf16.gmra.mrb[0].mxu0 %v467
      %v608 = vpop.f32.mrb[0].mxu0
      %v609 = vadd.f32 0.0, %v608
      %v610 = vpop.f32.mrb[0].mxu0
      %v611 = vpop.f32.mrb[0].mxu0
      %v612 = vadd.f32 0.0, %v611
      %v613 = vpop.f32.mrb[0].mxu0
      %614 = vmatprep.mubr.bf16.mxu0 0
      %615 = vmatmul.mubr.bf16.gmra.mrb[0].mxu0 %v468
      %v616 = vpop.f32.mrb[0].mxu0
      %v617 = vadd.f32 0.0, %v616
      %v618 = vpop.f32.mrb[0].mxu0
      %v619 = vpop.f32.mrb[0].mxu0
      %v620 = vadd.f32 0.0, %v619
      %v621 = vpop.f32.mrb[0].mxu0
      %622 = vmatprep.mubr.bf16.mxu0 0
      %623 = vmatmul.mubr.bf16.gmra.mrb[0].mxu0 %v469
      %v624 = vpop.f32.mrb[0].mxu0
      %v625 = vadd.f32 0.0, %v624
      %v626 = vpop.f32.mrb[0].mxu0
      %v627 = vpop.f32.mrb[0].mxu0
      %v628 = vadd.f32 0.0, %v627
      %v629 = vpop.f32.mrb[0].mxu0
      %630 = vdwg.mxu0
      %v647 = vunpack.c.l.b16 %v422
      %v648 = vunpack.c.l.b16 %v423
      %v649 = vunpack.c.l.b16 %v424
      %v650 = vunpack.c.l.b16 %v425
      %v651 = vunpack.c.l.b16 %v426
      %v652 = vunpack.c.l.b16 %v427
      %v653 = vunpack.c.l.b16 %v428
      %v654 = vunpack.c.l.b16 %v429
      %v655 = vunpack.c.l.b16 %v430
      %v656 = vunpack.c.l.b16 %v431
      %v657 = vunpack.c.l.b16 %v432
      %v658 = vunpack.c.l.b16 %v433
      %v659 = vunpack.c.l.b16 %v434
      %v660 = vunpack.c.l.b16 %v435
      %v661 = vunpack.c.l.b16 %v436
      %v662 = vunpack.c.l.b16 %v437
      %v663 = vpack.c.b16 %v648, %v647
      %v664 = vpack.c.b16 %v650, %v649
      %v665 = vpack.c.b16 %v652, %v651
      %v666 = vpack.c.b16 %v654, %v653
      %v667 = vpack.c.b16 %v656, %v655
      %v668 = vpack.c.b16 %v658, %v657
      %v669 = vpack.c.b16 %v660, %v659
      %v670 = vpack.c.b16 %v662, %v661
      %679 = vmatprep.subr.bf16.mxu0 0
      %680 = vmatpush1.bf16.msra.mxu0 %v663
      %681 = vmatprep.subr.bf16.mxu0 0
      %682 = vmatpush1.bf16.msra.mxu0 %v664
      %683 = vmatprep.subr.bf16.mxu0 0
      %684 = vmatpush1.bf16.msra.mxu0 %v665
      %685 = vmatprep.subr.bf16.mxu0 0
      %686 = vmatpush1.bf16.msra.mxu0 %v666
      %687 = vmatprep.subr.bf16.mxu0 0
      %688 = vmatpush1.bf16.msra.mxu0 %v667
      %689 = vmatprep.subr.bf16.mxu0 0
      %690 = vmatpush1.bf16.msra.mxu0 %v668
      %691 = vmatprep.subr.bf16.mxu0 0
      %692 = vmatpush1.bf16.msra.mxu0 %v669
      %693 = vmatprep.subr.bf16.mxu0 0
      %694 = vmatpush1.bf16.msra.mxu0 %v670
      %695 = vmatprep.subr.bf16.mxu0 0
      %696 = vmatpush1.bf16.msra.mxu0 0
      %697 = vmatprep.subr.bf16.mxu0 0
      %698 = vmatpush1.bf16.msra.mxu0 0
      %699 = vmatprep.subr.bf16.mxu0 0
      %700 = vmatpush1.bf16.msra.mxu0 0
      %701 = vmatprep.subr.bf16.mxu0 0
      %702 = vmatpush1.bf16.msra.mxu0 0
      %703 = vmatprep.subr.bf16.mxu0 0
      %704 = vmatpush1.bf16.msra.mxu0 0
      %705 = vmatprep.subr.bf16.mxu0 0
      %706 = vmatpush1.bf16.msra.mxu0 0
      %707 = vmatprep.subr.bf16.mxu0 0
      %708 = vmatpush1.bf16.msra.mxu0 0
      %709 = vmatprep.subr.bf16.mxu0 0
      %710 = vmatpush1.bf16.msra.mxu0 0
      %711 = vmatprep.mubr.bf16.mxu0 0
      %712 = vmatmul.mubr.bf16.gmra.mrb[0].mxu0 %v454
      %v713 = vpop.f32.mrb[0].mxu0
      %v714 = vadd.f32 %v569, %v713
      %v715 = vpop.f32.mrb[0].mxu0
      %v716 = vpop.f32.mrb[0].mxu0
      %v717 = vadd.f32 %v572, %v716
      %v718 = vpop.f32.mrb[0].mxu0
      %719 = vmatprep.mubr.bf16.mxu0 0
      %720 = vmatmul.mubr.bf16.gmra.mrb[0].mxu0 %v455
      %v721 = vpop.f32.mrb[0].mxu0
      %v722 = vadd.f32 %v577, %v721
      %v723 = vpop.f32.mrb[0].mxu0
      %v724 = vpop.f32.mrb[0].mxu0
      %v725 = vadd.f32 %v580, %v724
      %v726 = vpop.f32.mrb[0].mxu0
      %727 = vmatprep.mubr.bf16.mxu0 0
      %728 = vmatmul.mubr.bf16.gmra.mrb[0].mxu0 %v456
      %v729 = vpop.f32.mrb[0].mxu0
      %v730 = vadd.f32 %v585, %v729
      %v731 = vpop.f32.mrb[0].mxu0
      %v732 = vpop.f32.mrb[0].mxu0
      %v733 = vadd.f32 %v588, %v732
      %v734 = vpop.f32.mrb[0].mxu0
      %735 = vmatprep.mubr.bf16.mxu0 0
      %736 = vmatmul.mubr.bf16.gmra.mrb[0].mxu0 %v457
      %v737 = vpop.f32.mrb[0].mxu0
      %v738 = vadd.f32 %v593, %v737
      %v739 = vpop.f32.mrb[0].mxu0
      %v740 = vpop.f32.mrb[0].mxu0
      %v741 = vadd.f32 %v596, %v740
      %v742 = vpop.f32.mrb[0].mxu0
      %743 = vmatprep.mubr.bf16.mxu0 0
      %744 = vmatmul.mubr.bf16.gmra.mrb[0].mxu0 %v458
      %v745 = vpop.f32.mrb[0].mxu0
      %v746 = vadd.f32 %v601, %v745
      %v747 = vpop.f32.mrb[0].mxu0
      %v748 = vpop.f32.mrb[0].mxu0
      %v749 = vadd.f32 %v604, %v748
      %v750 = vpop.f32.mrb[0].mxu0
      %751 = vmatprep.mubr.bf16.mxu0 0
      %752 = vmatmul.mubr.bf16.gmra.mrb[0].mxu0 %v459
      %v753 = vpop.f32.mrb[0].mxu0
      %v754 = vadd.f32 %v609, %v753
      %v755 = vpop.f32.mrb[0].mxu0
      %v756 = vpop.f32.mrb[0].mxu0
      %v757 = vadd.f32 %v612, %v756
      %v758 = vpop.f32.mrb[0].mxu0
      %759 = vmatprep.mubr.bf16.mxu0 0
      %760 = vmatmul.mubr.bf16.gmra.mrb[0].mxu0 %v460
      %v761 = vpop.f32.mrb[0].mxu0
      %v762 = vadd.f32 %v617, %v761
      %v763 = vpop.f32.mrb[0].mxu0
      %v764 = vpop.f32.mrb[0].mxu0
      %v765 = vadd.f32 %v620, %v764
      %v766 = vpop.f32.mrb[0].mxu0
      %767 = vmatprep.mubr.bf16.mxu0 0
      %768 = vmatmul.mubr.bf16.gmra.mrb[0].mxu0 %v461
      %v769 = vpop.f32.mrb[0].mxu0
      %v770 = vadd.f32 %v625, %v769
      %v771 = vpop.f32.mrb[0].mxu0
      %v772 = vpop.f32.mrb[0].mxu0
      %v773 = vadd.f32 %v628, %v772
      %v774 = vpop.f32.mrb[0].mxu0
      %775 = vdwg.mxu0
      %v776 = vld [vmem:[%s6] sm:$0x1]
      %v777 = vlaneseq
      %v778 = vshrl.u32 %v777, 7
      %v779 = vsub.s32 0, %v778
      %v780 = vrot.slane %v776, %v779
      %v781 = vadd.f32 %v714, %v780
      %v782 = vadd.f32 %v717, %v780
      %v783 = vadd.f32 %v722, %v780
      %v784 = vadd.f32 %v725, %v780
      %v785 = vadd.f32 %v730, %v780
      %v786 = vadd.f32 %v733, %v780
      %v787 = vadd.f32 %v738, %v780
      %v788 = vadd.f32 %v741, %v780
      %v789 = vadd.f32 %v746, %v780
      %v790 = vadd.f32 %v749, %v780
      %v791 = vadd.f32 %v754, %v780
      %v792 = vadd.f32 %v757, %v780
      %v793 = vadd.f32 %v762, %v780
      %v794 = vadd.f32 %v765, %v780
      %v795 = vadd.f32 %v770, %v780
      %v796 = vadd.f32 %v773, %v780
      %v797 = vmax.f32 %v781, 0.0
      %v798 = vmax.f32 %v782, 0.0
      %v799 = vmax.f32 %v783, 0.0
      %v800 = vmax.f32 %v784, 0.0
      %v801 = vmax.f32 %v785, 0.0
      %v802 = vmax.f32 %v786, 0.0
      %v803 = vmax.f32 %v787, 0.0
      %v804 = vmax.f32 %v788, 0.0
      %v805 = vmax.f32 %v789, 0.0
      %v806 = vmax.f32 %v790, 0.0
      %v807 = vmax.f32 %v791, 0.0
      %v808 = vmax.f32 %v792, 0.0
      %v809 = vmax.f32 %v793, 0.0
      %v810 = vmax.f32 %v794, 0.0
      %v811 = vmax.f32 %v795, 0.0
      %v812 = vmax.f32 %v796, 0.0
      %v813 = vpack.c.bf16 %v798, %v797
      %v814 = vpack.c.bf16 %v800, %v799
      %v815 = vpack.c.bf16 %v802, %v801
      %v816 = vpack.c.bf16 %v804, %v803
      %v817 = vpack.c.bf16 %v806, %v805
      %v818 = vpack.c.bf16 %v808, %v807
      %v819 = vpack.c.bf16 %v810, %v809
      %v820 = vpack.c.bf16 %v812, %v811
      %v821 = vld [vmem:[#allocation12] sm:$0xf]
      %v822 = vld [vmem:[#allocation12 + $0x4] sm:$0xf]
      %v823 = vld [vmem:[#allocation12 + $0x8] sm:$0xf]
      %v824 = vld [vmem:[#allocation12 + $0xc] sm:$0xf]
      %v825 = vld [vmem:[#allocation12 + $0x10] sm:$0xf]
      %v826 = vld [vmem:[#allocation12 + $0x14] sm:$0xf]
      %v827 = vld [vmem:[#allocation12 + $0x18] sm:$0xf]
      %v828 = vld [vmem:[#allocation12 + $0x1c] sm:$0xf]
      %v829 = vld [vmem:[#allocation12 + $0x20] sm:$0xf]
      %v830 = vld [vmem:[#allocation12 + $0x24] sm:$0xf]
      %v831 = vld [vmem:[#allocation12 + $0x28] sm:$0xf]
      %v832 = vld [vmem:[#allocation12 + $0x2c] sm:$0xf]
      %v833 = vld [vmem:[#allocation12 + $0x30] sm:$0xf]
      %v834 = vld [vmem:[#allocation12 + $0x34] sm:$0xf]
      %v835 = vld [vmem:[#allocation12 + $0x38] sm:$0xf]
      %v836 = vld [vmem:[#allocation12 + $0x3c] sm:$0xf]
      %v837 = vld [vmem:[%s6 + $0x1] sm:$0x1]
      %v838 = vlaneseq
      %v839 = vshrl.u32 %v838, 7
      %v840 = vsub.s32 0, %v839
      %v841 = vrot.slane %v837, %v840
      %v858 = vunpack.c.l.b16 %v821
      %v859 = vunpack.c.l.b16 %v822
      %v860 = vunpack.c.l.b16 %v823
      %v861 = vunpack.c.l.b16 %v824
      %v862 = vunpack.c.l.b16 %v825
      %v863 = vunpack.c.l.b16 %v826
      %v864 = vunpack.c.l.b16 %v827
      %v865 = vunpack.c.l.b16 %v828
      %v866 = vunpack.c.l.b16 %v829
      %v867 = vunpack.c.l.b16 %v830
      %v868 = vunpack.c.l.b16 %v831
      %v869 = vunpack.c.l.b16 %v832
      %v870 = vunpack.c.l.b16 %v833
      %v871 = vunpack.c.l.b16 %v834
      %v872 = vunpack.c.l.b16 %v835
      %v873 = vunpack.c.l.b16 %v836
      %v874 = vpack.c.b16 %v859, %v858
      %v875 = vpack.c.b16 %v861, %v860
      %v876 = vpack.c.b16 %v863, %v862
      %v877 = vpack.c.b16 %v865, %v864
      %v878 = vpack.c.b16 %v867, %v866
      %v879 = vpack.c.b16 %v869, %v868
      %v880 = vpack.c.b16 %v871, %v870
      %v881 = vpack.c.b16 %v873, %v872
      %890 = vmatprep.subr.bf16.mxu0 0
      %891 = vmatpush1.bf16.msra.mxu0 %v874
      %892 = vmatprep.subr.bf16.mxu0 0
      %893 = vmatpush1.bf16.msra.mxu0 %v875
      %894 = vmatprep.subr.bf16.mxu0 0
      %895 = vmatpush1.bf16.msra.mxu0 %v876
      %896 = vmatprep.subr.bf16.mxu0 0
      %897 = vmatpush1.bf16.msra.mxu0 %v877
      %898 = vmatprep.subr.bf16.mxu0 0
      %899 = vmatpush1.bf16.msra.mxu0 %v878
      %900 = vmatprep.subr.bf16.mxu0 0
      %901 = vmatpush1.bf16.msra.mxu0 %v879
      %902 = vmatprep.subr.bf16.mxu0 0
      %903 = vmatpush1.bf16.msra.mxu0 %v880
      %904 = vmatprep.subr.bf16.mxu0 0
      %905 = vmatpush1.bf16.msra.mxu0 %v881
      %906 = vmatprep.subr.bf16.mxu0 0
      %907 = vmatpush1.bf16.msra.mxu0 0
      %908 = vmatprep.subr.bf16.mxu0 0
      %909 = vmatpush1.bf16.msra.mxu0 0
      %910 = vmatprep.subr.bf16.mxu0 0
      %911 = vmatpush1.bf16.msra.mxu0 0
      %912 = vmatprep.subr.bf16.mxu0 0
      %913 = vmatpush1.bf16.msra.mxu0 0
      %914 = vmatprep.subr.bf16.mxu0 0
      %915 = vmatpush1.bf16.msra.mxu0 0
      %916 = vmatprep.subr.bf16.mxu0 0
      %917 = vmatpush1.bf16.msra.mxu0 0
      %918 = vmatprep.subr.bf16.mxu0 0
      %919 = vmatpush1.bf16.msra.mxu0 0
      %920 = vmatprep.subr.bf16.mxu0 0
      %921 = vmatpush1.bf16.msra.mxu0 0
      %922 = vmatprep.mubr.bf16.mxu0 0
      %923 = vmatmul.mubr.bf16.gmra.mrb[0].mxu0 %v813
      %v924 = vpop.f32.mrb[0].mxu0
      %v925 = vadd.f32 %v841, %v924
      %v926 = vpop.f32.mrb[0].mxu0
      %v927 = vpop.f32.mrb[0].mxu0
      %v928 = vadd.f32 %v841, %v927
      %v929 = vpop.f32.mrb[0].mxu0
      %930 = vmatprep.mubr.bf16.mxu0 0
      %931 = vmatmul.mubr.bf16.gmra.mrb[0].mxu0 %v814
      %v932 = vpop.f32.mrb[0].mxu0
      %v933 = vadd.f32 %v841, %v932
      %v934 = vpop.f32.mrb[0].mxu0
      %v935 = vpop.f32.mrb[0].mxu0
      %v936 = vadd.f32 %v841, %v935
      %v937 = vpop.f32.mrb[0].mxu0
      %938 = vmatprep.mubr.bf16.mxu0 0
      %939 = vmatmul.mubr.bf16.gmra.mrb[0].mxu0 %v815
      %v940 = vpop.f32.mrb[0].mxu0
      %v941 = vadd.f32 %v841, %v940
      %v942 = vpop.f32.mrb[0].mxu0
      %v943 = vpop.f32.mrb[0].mxu0
      %v944 = vadd.f32 %v841, %v943
      %v945 = vpop.f32.mrb[0].mxu0
      %946 = vmatprep.mubr.bf16.mxu0 0
      %947 = vmatmul.mubr.bf16.gmra.mrb[0].mxu0 %v816
      %v948 = vpop.f32.mrb[0].mxu0
      %v949 = vadd.f32 %v841, %v948
      %v950 = vpop.f32.mrb[0].mxu0
      %v951 = vpop.f32.mrb[0].mxu0
      %v952 = vadd.f32 %v841, %v951
      %v953 = vpop.f32.mrb[0].mxu0
      %954 = vmatprep.mubr.bf16.mxu0 0
      %955 = vmatmul.mubr.bf16.gmra.mrb[0].mxu0 %v817
      %v956 = vpop.f32.mrb[0].mxu0
      %v957 = vadd.f32 %v841, %v956
      %v958 = vpop.f32.mrb[0].mxu0
      %v959 = vpop.f32.mrb[0].mxu0
      %v960 = vadd.f32 %v841, %v959
      %v961 = vpop.f32.mrb[0].mxu0
      %962 = vmatprep.mubr.bf16.mxu0 0
      %963 = vmatmul.mubr.bf16.gmra.mrb[0].mxu0 %v818
      %v964 = vpop.f32.mrb[0].mxu0
      %v965 = vadd.f32 %v841, %v964
      %v966 = vpop.f32.mrb[0].mxu0
      %v967 = vpop.f32.mrb[0].mxu0
      %v968 = vadd.f32 %v841, %v967
      %v969 = vpop.f32.mrb[0].mxu0
      %970 = vmatprep.mubr.bf16.mxu0 0
      %971 = vmatmul.mubr.bf16.gmra.mrb[0].mxu0 %v819
      %v972 = vpop.f32.mrb[0].mxu0
      %v973 = vadd.f32 %v841, %v972
      %v974 = vpop.f32.mrb[0].mxu0
      %v975 = vpop.f32.mrb[0].mxu0
      %v976 = vadd.f32 %v841, %v975
      %v977 = vpop.f32.mrb[0].mxu0
      %978 = vmatprep.mubr.bf16.mxu0 0
      %979 = vmatmul.mubr.bf16.gmra.mrb[0].mxu0 %v820
      %v980 = vpop.f32.mrb[0].mxu0
      %v981 = vadd.f32 %v841, %v980
      %v982 = vpop.f32.mrb[0].mxu0
      %v983 = vpop.f32.mrb[0].mxu0
      %v984 = vadd.f32 %v841, %v983
      %v985 = vpop.f32.mrb[0].mxu0
      %986 = vdwg.mxu0
      %v987 = vadd.f32 %v406, %v925
      %v988 = vadd.f32 %v407, %v928
      %v989 = vadd.f32 %v408, %v933
      %v990 = vadd.f32 %v409, %v936
      %v991 = vadd.f32 %v410, %v941
      %v992 = vadd.f32 %v411, %v944
      %v993 = vadd.f32 %v412, %v949
      %v994 = vadd.f32 %v413, %v952
      %v995 = vadd.f32 %v414, %v957
      %v996 = vadd.f32 %v415, %v960
      %v997 = vadd.f32 %v416, %v965
      %v998 = vadd.f32 %v417, %v968
      %v999 = vadd.f32 %v418, %v973
      %v1000 = vadd.f32 %v419, %v976
      %v1001 = vadd.f32 %v420, %v981
      %v1002 = vadd.f32 %v421, %v984
      %1003 = vst [vmem:[#allocation14] sm:$0xff] %v987
      %1004 = vst [vmem:[#allocation14 + $0x8] sm:$0xff] %v988
      %1005 = vst [vmem:[#allocation14 + $0x10] sm:$0xff] %v989
      %1006 = vst [vmem:[#allocation14 + $0x18] sm:$0xff] %v990
      %1007 = vst [vmem:[#allocation14 + $0x20] sm:$0xff] %v991
      %1008 = vst [vmem:[#allocation14 + $0x28] sm:$0xff] %v992
      %1009 = vst [vmem:[#allocation14 + $0x30] sm:$0xff] %v993
      %1010 = vst [vmem:[#allocation14 + $0x38] sm:$0xff] %v994
      %1011 = vst [vmem:[#allocation14 + $0x40] sm:$0xff] %v995
      %1012 = vst [vmem:[#allocation14 + $0x48] sm:$0xff] %v996
      %1013 = vst [vmem:[#allocation14 + $0x50] sm:$0xff] %v997
      %1014 = vst [vmem:[#allocation14 + $0x58] sm:$0xff] %v998
      %1015 = vst [vmem:[#allocation14 + $0x60] sm:$0xff] %v999
      %1016 = vst [vmem:[#allocation14 + $0x68] sm:$0xff] %v1000
      %1017 = vst [vmem:[#allocation14 + $0x70] sm:$0xff] %v1001
      %1018 = vst [vmem:[#allocation14 + $0x78] sm:$0xff] %v1002
    $region61: #{tpu_custom_call.1} parent=1 // pred_fallthru
      _
    // Predicated region
    $region62: #{tpu_custom_call.1} parent=1 // pred_check
      _
    $region63: #{tpu_custom_call.1} parent=1 // pred_check_branch
      %1020 = sbr.rel (0) target = $region65
    $region64: #{tpu_custom_call.1} parent=1 // pred_region
      %s1022 = ssub.s32 2048, 2048
      %1023 = vsyncadd [#allocation5], %s1022
      %s1024 = sshll.u32 [#allocation14], 4
      %s1025 = int_to_ptr.vmem [resolvable:$true] %s1024
      %1030 = dma.vmem_to_hbm [thread:$0]  %s1025, 2048, %s7, [#allocation5], 128, 128, 8
    $region65: #{tpu_custom_call.1} parent=1 // pred_fallthru
      _
    // Predicated region
    $region66: #{tpu_custom_call.1} parent=1 // pred_check
      _
    $region67: #{tpu_custom_call.1} parent=1 // pred_check_branch
      %1032 = sbr.rel (0) target = $region69
    $region68: #{tpu_custom_call.1} parent=1 // pred_region
      %1033 = dma.done [#allocation5], 2048
    $region69: #{tpu_custom_call.1} parent=1 // pred_fallthru
      _
    %1034 = vsyncpa [#allocation4], 1
    %1035 = vsyncpa [#allocation7], 1
    %1036 = vsyncpa [#allocation10], 1
    %1037 = vsyncpa [#allocation13], 1
    %1038 = vsyncpa [#allocation5], 1

</llo_original>
